<compile_context>
chip_gen: v5e
topology: v5e:2x2
jax: 0.10.0
libtpu: 0.0.40
codegen_flags: <defaults>
</compile_context>

<pallas_src>
import functools

import jax
import jax.numpy as jnp
from jax import lax
from jax.experimental import pallas as pl
from jax.experimental.pallas import tpu as pltpu

_VMEM_LIMIT = 32 * 1024 * 1024     # explicit scoped-VMEM limit (safe on v5e/v6e/v7x)
_TN_DIMS = (((0,), (0,)), ((), ()))  # contract over the tile-row axis: A^T @ B


def _round_up(x, m):
    return (x + m - 1) // m * m


def _choose_tile(n, want):
    """Row tile: close to `want`, multiple of 8, never (much) larger than n."""
    want = max(8, _round_up(min(want, 2048), 8))
    if n >= want:
        return want
    return max(8, _round_up(n, 8))


def _pad_rows(x, mult):
    pad = (-x.shape[0]) % mult
    if pad:
        x = jnp.pad(x, ((0, pad), (0, 0)))   # zero rows: safe for the Gram reduction
    return x


# --------------------------------------------------------------------------- kernels
def _gram_partial_kernel(p_ref, e_ref, m_ref, g_ref, *, compute_dtype):
    """Accumulate partial M = P^T P and G0 = P^T E0 over row tiles (user table)."""
    @pl.when(pl.program_id(0) == 0)
    def _():
        m_ref[...] = jnp.zeros_like(m_ref)
        g_ref[...] = jnp.zeros_like(g_ref)

    p = p_ref[...].astype(compute_dtype)
    e = e_ref[...].astype(compute_dtype)
    m_ref[...] += lax.dot_general(p, p, _TN_DIMS, preferred_element_type=jnp.float32)
    g_ref[...] += lax.dot_general(p, e, _TN_DIMS, preferred_element_type=jnp.float32)


def _gram_finalize_kernel(p_ref, e_ref, m0_ref, g0_ref, gcat_ref, m_acc, g_acc, *,
                          compute_dtype, norm, n_layers):
    """Continue the M/G0 reduction (item table), then fuse the tiny layer chain:
    gcat = norm * [G0 | M G0 | ... | M^{L-1} G0], written once at the last step."""
    @pl.when(pl.program_id(0) == 0)
    def _():
        m_acc[...] = m0_ref[...]
        g_acc[...] = g0_ref[...]

    p = p_ref[...].astype(compute_dtype)
    e = e_ref[...].astype(compute_dtype)
    m_acc[...] += lax.dot_general(p, p, _TN_DIMS, preferred_element_type=jnp.float32)
    g_acc[...] += lax.dot_general(p, e, _TN_DIMS, preferred_element_type=jnp.float32)

    @pl.when(pl.program_id(0) == pl.num_programs(0) - 1)
    def _():
        m = m_acc[...]
        g = g_acc[...]
        parts = [g]
        for _ in range(n_layers - 1):
            g = jnp.dot(m, g, preferred_element_type=jnp.float32)
            parts.append(g)
        gcat_ref[...] = (norm * jnp.concatenate(parts, axis=1)).astype(gcat_ref.dtype)


def _expand_kernel(p_ref, e0_ref, gcat_ref, w_ref, out_ref, *, compute_dtype):
    """Per row tile i: out = [E0 | w1*tanh(P@G'0) | ... | wL*tanh(P@G'L-1)].

    gcat_ref already holds norm * [G0 | M G0 | ...]; w_ref is a [1, L*D] weight row.
    The output tile [tm, (L+1)*D] is a single lane-dense store (128 lanes for D=32).
    """
    p = p_ref[...].astype(compute_dtype)
    z = jnp.dot(p, gcat_ref[...], preferred_element_type=jnp.float32)   # [tm, L*D]
    t = jnp.tanh(z) * w_ref[...]                                        # [1,L*D] bcast
    out_ref[...] = jnp.concatenate(
        [e0_ref[...].astype(jnp.float32), t], axis=1).astype(out_ref.dtype)


# ---------------------------------------------------------------------- pallas calls
def _gram_partial(prop, emb, *, tk, compute_dtype):
    n, pdim = prop.shape
    d = emb.shape[1]
    kernel = functools.partial(_gram_partial_kernel, compute_dtype=compute_dtype)
    return pl.pallas_call(
        kernel,
        out_shape=(jax.ShapeDtypeStruct((pdim, pdim), jnp.float32),
                   jax.ShapeDtypeStruct((pdim, d), jnp.float32)),
        grid_spec=pltpu.PrefetchScalarGridSpec(
            num_scalar_prefetch=0,
            grid=(n // tk,),
            in_specs=[pl.BlockSpec((tk, pdim), lambda k: (k, 0)),   # P rows
                      pl.BlockSpec((tk, d), lambda k: (k, 0))],     # E0 rows
            out_specs=(pl.BlockSpec((pdim, pdim), lambda k: (0, 0)),
                       pl.BlockSpec((pdim, d), lambda k: (0, 0))),
        ),
        compiler_params=pltpu.CompilerParams(
            dimension_semantics=("arbitrary",),
            vmem_limit_bytes=_VMEM_LIMIT),
    )(prop, emb)


def _gram_finalize(prop, emb, m0, g0, *, tk, compute_dtype, norm, n_layers):
    n, pdim = prop.shape
    d = emb.shape[1]
    ld = n_layers * d
    kernel = functools.partial(_gram_finalize_kernel, compute_dtype=compute_dtype,
                               norm=norm, n_layers=n_layers)
    return pl.pallas_call(
        kernel,
        out_shape=jax.ShapeDtypeStruct((pdim, ld), compute_dtype),
        grid_spec=pltpu.PrefetchScalarGridSpec(
            num_scalar_prefetch=0,
            grid=(n // tk,),
            in_specs=[pl.BlockSpec((tk, pdim), lambda k: (k, 0)),     # P rows
                      pl.BlockSpec((tk, d), lambda k: (k, 0)),        # E0 rows
                      pl.BlockSpec((pdim, pdim), lambda k: (0, 0)),   # partial M (users)
                      pl.BlockSpec((pdim, d), lambda k: (0, 0))],     # partial G0 (users)
            out_specs=pl.BlockSpec((pdim, ld), lambda k: (0, 0)),
            scratch_shapes=[pltpu.VMEM((pdim, pdim), jnp.float32),
                            pltpu.VMEM((pdim, d), jnp.float32)],
        ),
        compiler_params=pltpu.CompilerParams(
            dimension_semantics=("arbitrary",),
            vmem_limit_bytes=_VMEM_LIMIT),
    )(prop, emb, m0, g0)


def _expand(prop, emb0, gcat, w_row, *, tm, compute_dtype):
    n, pdim = prop.shape
    d = emb0.shape[1]
    ld = gcat.shape[1]
    kernel = functools.partial(_expand_kernel, compute_dtype=compute_dtype)
    return pl.pallas_call(
        kernel,
        out_shape=jax.ShapeDtypeStruct((n, d + ld), jnp.float32),
        grid_spec=pltpu.PrefetchScalarGridSpec(
            num_scalar_prefetch=0,
            grid=(n // tm,),
            in_specs=[pl.BlockSpec((tm, pdim), lambda i: (i, 0)),   # P rows
                      pl.BlockSpec((tm, d), lambda i: (i, 0)),      # E0 rows
                      pl.BlockSpec((pdim, ld), lambda i: (0, 0)),   # norm*[G0|G1|G2]
                      pl.BlockSpec((1, ld), lambda i: (0, 0))],     # layer weights row
            out_specs=pl.BlockSpec((tm, d + ld), lambda i: (i, 0)),
        ),
        compiler_params=pltpu.CompilerParams(
            dimension_semantics=("parallel",),   # >=2 tiles -> both TCs on v7x
            vmem_limit_bytes=_VMEM_LIMIT),
    )(prop, emb0, gcat, w_row)


# --------------------------------------------------------------------------- wrapper
@functools.partial(jax.jit, static_argnames=("n_layers", "tm", "tk", "use_bf16"))
def sgnn_forward(adj, user_emb, item_emb, user_prop, item_prop, *,
                 n_layers=3, tm=1024, tk=1024, use_bf16=True):
    """SGNN.forward -> (user_embeddings [Nu,(L+1)*D], item_embeddings [Ni,(L+1)*D])."""
    del adj  # SGNN.forward accepts adj but never uses it.
    compute_dtype = jnp.bfloat16 if use_bf16 else jnp.float32

    user_emb = user_emb.astype(jnp.float32)
    item_emb = item_emb.astype(jnp.float32)
    user_prop = user_prop.astype(jnp.float32)
    item_prop = item_prop.astype(jnp.float32)

    n_users, d = user_emb.shape
    n_items = item_emb.shape[0]
    n = n_users + n_items
    norm = 1.0 / n
    layer_w = jnp.repeat(
        jnp.asarray([1.0 / (l + 1) for l in range(1, n_layers + 1)], jnp.float32), d
    )[None, :]                                                   # [1, L*D]

    # Heavy pass 1: streaming Gram reduction (users, then items + fused layer chain).
    tk_u = _choose_tile(n_users, tk)
    tk_i = _choose_tile(n_items, tk)
    m0, g0 = _gram_partial(_pad_rows(user_prop, tk_u), _pad_rows(user_emb, tk_u),
                           tk=tk_u, compute_dtype=compute_dtype)
    gcat = _gram_finalize(_pad_rows(item_prop, tk_i), _pad_rows(item_emb, tk_i),
                          m0, g0, tk=tk_i, compute_dtype=compute_dtype,
                          norm=norm, n_layers=n_layers)          # [128, L*D]

    # Heavy pass 2: expansion + tanh + per-layer weights, one call per table
    # (writes each final output directly -- no concat / split in the wrapper).
    def run_expand(prop, emb0, count):
        tm_eff = _choose_tile(count, tm)
        out = _expand(_pad_rows(prop, tm_eff), _pad_rows(emb0, tm_eff), gcat, layer_w,
                      tm=tm_eff, compute_dtype=compute_dtype)
        return out[:count] if out.shape[0] != count else out

    return (run_expand(user_prop, user_emb, n_users),
            run_expand(item_prop, item_emb, n_items))


def _xavier_uniform(key, shape, dtype=jnp.float32):
    # nn.init.xavier_uniform_ on a 2-D weight: limit = sqrt(6 / (fan_in + fan_out)).
    limit = (6.0 / (shape[0] + shape[1])) ** 0.5
    return jax.random.uniform(key, shape, dtype, minval=-limit, maxval=limit)


if __name__ == "__main__":
    # Small, TPU-tile-friendly sizes consistent with the module.
    n_users, n_items, emb_dim, prop_dim = 64, 64, 32, 128
    N = n_users + n_items

    key = jax.random.PRNGKey(0)
    k_u, k_i, k_up, k_ip = jax.random.split(key, 4)
    user_emb = _xavier_uniform(k_u, (n_users, emb_dim))
    item_emb = _xavier_uniform(k_i, (n_items, emb_dim))
    user_prop = _xavier_uniform(k_up, (n_users, prop_dim))
    item_prop = _xavier_uniform(k_ip, (n_items, prop_dim))
    # adj is part of forward's signature but unused by SGNN's math.
    adj = jnp.zeros((N, N), jnp.float32)

    # Performance path (bf16 MXU operands, f32 accumulation).
    users, items = sgnn_forward(adj, user_emb, item_emb, user_prop, item_prop,
                                use_bf16=True)
    users = jax.block_until_ready(users)
    items = jax.block_until_ready(items)

    # Exact path (f32 everywhere) for a tight correctness check.
    users_f32, items_f32 = sgnn_forward(adj, user_emb, item_emb, user_prop, item_prop,
                                        use_bf16=False)
    users_f32 = jax.block_until_ready(users_f32)
    items_f32 = jax.block_until_ready(items_f32)

    # Plain-JAX reference mirroring the PyTorch forward literally.
    emb = jnp.concatenate([user_emb, item_emb], axis=0)
    prop = jnp.concatenate([user_prop, item_prop], axis=0)
    norm = 1.0 / N
    layer_weight = [1.0 / (l + 1) for l in range(4)]
    all_ref = [emb]
    e = emb
    for i in range(3):
        e = prop.T @ e
        e = prop @ e
        all_ref.append(layer_weight[i + 1] * jnp.tanh(norm * e))
    ref = jnp.concatenate(all_ref, axis=1)

    assert users.shape == (n_users, 4 * emb_dim)
    assert items.shape == (n_items, 4 * emb_dim)
    # Dtype-aware tolerances: f32 path tight, bf16 path accounts for input rounding.
    assert jnp.allclose(users_f32, ref[:n_users], atol=5e-5, rtol=1e-4)
    assert jnp.allclose(items_f32, ref[n_users:], atol=5e-5, rtol=1e-4)
    assert jnp.allclose(users, ref[:n_users], atol=5e-3, rtol=5e-2)
    assert jnp.allclose(items, ref[n_users:], atol=5e-3, rtol=5e-2)

    print("KERNEL_OK")
</pallas_src>

<mosaic_0001>
module attributes {stable_mosaic.version = 11 : i64} {
  func.func @_gram_finalize_kernel(%arg0: i32, %arg1: memref<64x128xf32, #tpu.memory_space<vmem>>, %arg2: memref<64x32xf32, #tpu.memory_space<vmem>>, %arg3: memref<128x128xf32, #tpu.memory_space<vmem>>, %arg4: memref<128x32xf32, #tpu.memory_space<vmem>>, %arg5: memref<128x96xbf16, #tpu.memory_space<vmem>>, %arg6: memref<128x128xf32, #tpu.memory_space<vmem>>, %arg7: memref<128x32xf32, #tpu.memory_space<vmem>>) attributes {dimension_semantics = [#tpu.dimension_semantics<arbitrary>], iteration_bounds = array<i64: 1>, scalar_prefetch = 0 : i64, scratch_operands = 2 : i64, tpu.core_type = #tpu.core_type<tc>, window_params = [{transform_indices = @transform_0, window_bounds = array<i64: 64, 128>}, {transform_indices = @transform_1, window_bounds = array<i64: 64, 32>}, {pipeline_mode = #tpu.pipeline_mode<synchronous>, transform_indices = @transform_2, window_bounds = array<i64: 128, 128>}, {pipeline_mode = #tpu.pipeline_mode<synchronous>, transform_indices = @transform_3, window_bounds = array<i64: 128, 32>}, {pipeline_mode = #tpu.pipeline_mode<synchronous>, transform_indices = @transform_4, window_bounds = array<i64: 128, 96>}]} {
    %c0_i32 = arith.constant 0 : i32
    %0 = arith.cmpi eq, %arg0, %c0_i32 : i32
    %1 = arith.extui %0 : i1 to i32
    %c0_i32_0 = arith.constant 0 : i32
    %2 = arith.cmpi ne, %1, %c0_i32_0 : i32
    scf.if %2 {
      %c0_15 = arith.constant 0 : index
      %c0_16 = arith.constant 0 : index
      %18 = vector.load %arg3[%c0_15, %c0_16] : memref<128x128xf32, #tpu.memory_space<vmem>>, vector<128x128xf32>
      %c0_17 = arith.constant 0 : index
      %c0_18 = arith.constant 0 : index
      %19 = vector.load %arg6[%c0_17, %c0_18] : memref<128x128xf32, #tpu.memory_space<vmem>>, vector<128x128xf32>
      tpu.vector_store %arg6[%c0_17, %c0_18], %18 {strides = array<i32>} : memref<128x128xf32, #tpu.memory_space<vmem>>, vector<128x128xf32>,
      %c0_19 = arith.constant 0 : index
      %c0_20 = arith.constant 0 : index
      %20 = vector.load %arg4[%c0_19, %c0_20] : memref<128x32xf32, #tpu.memory_space<vmem>>, vector<128x32xf32>
      %c0_21 = arith.constant 0 : index
      %c0_22 = arith.constant 0 : index
      %21 = vector.load %arg7[%c0_21, %c0_22] : memref<128x32xf32, #tpu.memory_space<vmem>>, vector<128x32xf32>
      tpu.vector_store %arg7[%c0_21, %c0_22], %20 {strides = array<i32>} : memref<128x32xf32, #tpu.memory_space<vmem>>, vector<128x32xf32>,
    } else {
    }
    %c0 = arith.constant 0 : index
    %c0_1 = arith.constant 0 : index
    %3 = vector.load %arg1[%c0, %c0_1] : memref<64x128xf32, #tpu.memory_space<vmem>>, vector<64x128xf32>
    %4 = arith.truncf %3 : vector<64x128xf32> to vector<64x128xbf16>
    %c0_2 = arith.constant 0 : index
    %c0_3 = arith.constant 0 : index
    %5 = vector.load %arg2[%c0_2, %c0_3] : memref<64x32xf32, #tpu.memory_space<vmem>>, vector<64x32xf32>
    %6 = arith.truncf %5 : vector<64x32xf32> to vector<64x32xbf16>
    %c0_4 = arith.constant 0 : index
    %c0_5 = arith.constant 0 : index
    %7 = vector.load %arg6[%c0_4, %c0_5] : memref<128x128xf32, #tpu.memory_space<vmem>>, vector<128x128xf32>
    %cst = arith.constant dense<0.000000e+00> : vector<128x128xf32>
    %8 = tpu.matmul %4, %4, %cst {dimension_numbers = #tpu.dot_dimension_numbers<[0], [0], [1], [1], [0, 1, 1, 1], [], []>} : vector<64x128xbf16>, vector<64x128xbf16>, vector<128x128xf32> -> vector<128x128xf32>
    %9 = arith.addf %7, %8 : vector<128x128xf32>
    %c0_6 = arith.constant 0 : index
    %c0_7 = arith.constant 0 : index
    %10 = vector.load %arg6[%c0_6, %c0_7] : memref<128x128xf32, #tpu.memory_space<vmem>>, vector<128x128xf32>
    tpu.vector_store %arg6[%c0_6, %c0_7], %9 {strides = array<i32>} : memref<128x128xf32, #tpu.memory_space<vmem>>, vector<128x128xf32>,
    %c0_8 = arith.constant 0 : index
    %c0_9 = arith.constant 0 : index
    %11 = vector.load %arg7[%c0_8, %c0_9] : memref<128x32xf32, #tpu.memory_space<vmem>>, vector<128x32xf32>
    %cst_10 = arith.constant dense<0.000000e+00> : vector<128x32xf32>
    %12 = tpu.matmul %4, %6, %cst_10 {dimension_numbers = #tpu.dot_dimension_numbers<[0], [0], [1], [1], [0, 1, 1, 1], [], []>} : vector<64x128xbf16>, vector<64x32xbf16>, vector<128x32xf32> -> vector<128x32xf32>
    %13 = arith.addf %11, %12 : vector<128x32xf32>
    %c0_11 = arith.constant 0 : index
    %c0_12 = arith.constant 0 : index
    %14 = vector.load %arg7[%c0_11, %c0_12] : memref<128x32xf32, #tpu.memory_space<vmem>>, vector<128x32xf32>
    tpu.vector_store %arg7[%c0_11, %c0_12], %13 {strides = array<i32>} : memref<128x32xf32, #tpu.memory_space<vmem>>, vector<128x32xf32>,
    %c0_i32_13 = arith.constant 0 : i32
    %15 = arith.cmpi eq, %arg0, %c0_i32_13 : i32
    %16 = arith.extui %15 : i1 to i32
    %c0_i32_14 = arith.constant 0 : i32
    %17 = arith.cmpi ne, %16, %c0_i32_14 : i32
    scf.if %17 {
      %c0_15 = arith.constant 0 : index
      %c0_16 = arith.constant 0 : index
      %18 = vector.load %arg6[%c0_15, %c0_16] : memref<128x128xf32, #tpu.memory_space<vmem>>, vector<128x128xf32>
      %c0_17 = arith.constant 0 : index
      %c0_18 = arith.constant 0 : index
      %19 = vector.load %arg7[%c0_17, %c0_18] : memref<128x32xf32, #tpu.memory_space<vmem>>, vector<128x32xf32>
      %cst_19 = arith.constant dense<0.000000e+00> : vector<128x32xf32>
      %20 = tpu.matmul %18, %19, %cst_19 {dimension_numbers = #tpu.dot_dimension_numbers<[1], [0], [0], [1], [0, 0, 1, 1], [], []>} : vector<128x128xf32>, vector<128x32xf32>, vector<128x32xf32> -> vector<128x32xf32>
      %cst_20 = arith.constant dense<0.000000e+00> : vector<128x32xf32>
      %21 = tpu.matmul %18, %20, %cst_20 {dimension_numbers = #tpu.dot_dimension_numbers<[1], [0], [0], [1], [0, 0, 1, 1], [], []>} : vector<128x128xf32>, vector<128x32xf32>, vector<128x32xf32> -> vector<128x32xf32>
      %22 = tpu.concatenate %19, %20, %21 in 1 : vector<128x32xf32>, vector<128x32xf32>, vector<128x32xf32> -> vector<128x96xf32>
      %cst_21 = arith.constant 7.812500e-03 : f32
      %23 = vector.broadcast %cst_21 : f32 to vector<128x96xf32>
      %24 = arith.mulf %23, %22 : vector<128x96xf32>
      %25 = arith.truncf %24 : vector<128x96xf32> to vector<128x96xbf16>
      %c0_22 = arith.constant 0 : index
      %c0_23 = arith.constant 0 : index
      %26 = vector.load %arg5[%c0_22, %c0_23] : memref<128x96xbf16, #tpu.memory_space<vmem>>, vector<128x96xbf16>
      tpu.vector_store %arg5[%c0_22, %c0_23], %25 {strides = array<i32>} : memref<128x96xbf16, #tpu.memory_space<vmem>>, vector<128x96xbf16>,
    } else {
    }
    return
  }
  func.func @transform_0(%arg0: i32) -> (i32, i32) {
    %c0_i32 = arith.constant 0 : i32
    %c0_i32_0 = arith.constant 0 : i32
    return %arg0, %c0_i32 : i32, i32
  }
  func.func @transform_1(%arg0: i32) -> (i32, i32) {
    %c0_i32 = arith.constant 0 : i32
    %c0_i32_0 = arith.constant 0 : i32
    return %arg0, %c0_i32 : i32, i32
  }
  func.func @transform_2(%arg0: i32) -> (i32, i32) {
    %c0_i32 = arith.constant 0 : i32
    %c0_i32_0 = arith.constant 0 : i32
    %c0_i32_1 = arith.constant 0 : i32
    return %c0_i32, %c0_i32_0 : i32, i32
  }
  func.func @transform_3(%arg0: i32) -> (i32, i32) {
    %c0_i32 = arith.constant 0 : i32
    %c0_i32_0 = arith.constant 0 : i32
    %c0_i32_1 = arith.constant 0 : i32
    return %c0_i32, %c0_i32_0 : i32, i32
  }
  func.func @transform_4(%arg0: i32) -> (i32, i32) {
    %c0_i32 = arith.constant 0 : i32
    %c0_i32_0 = arith.constant 0 : i32
    %c0_i32_1 = arith.constant 0 : i32
    return %c0_i32, %c0_i32_0 : i32, i32
  }
}

module attributes {stable_mosaic.version = 11 : i64} {
  func.func @_gram_partial_kernel(%arg0: i32, %arg1: memref<64x128xf32, #tpu.memory_space<vmem>>, %arg2: memref<64x32xf32, #tpu.memory_space<vmem>>, %arg3: memref<128x128xf32, #tpu.memory_space<vmem>>, %arg4: memref<128x32xf32, #tpu.memory_space<vmem>>) attributes {dimension_semantics = [#tpu.dimension_semantics<arbitrary>], iteration_bounds = array<i64: 1>, scalar_prefetch = 0 : i64, scratch_operands = 0 : i64, tpu.core_type = #tpu.core_type<tc>, window_params = [{transform_indices = @transform_0, window_bounds = array<i64: 64, 128>}, {transform_indices = @transform_1, window_bounds = array<i64: 64, 32>}, {pipeline_mode = #tpu.pipeline_mode<synchronous>, transform_indices = @transform_2, window_bounds = array<i64: 128, 128>}, {pipeline_mode = #tpu.pipeline_mode<synchronous>, transform_indices = @transform_3, window_bounds = array<i64: 128, 32>}]} {
    %c0_i32 = arith.constant 0 : i32
    %0 = arith.cmpi eq, %arg0, %c0_i32 : i32
    %1 = arith.extui %0 : i1 to i32
    %c0_i32_0 = arith.constant 0 : i32
    %2 = arith.cmpi ne, %1, %c0_i32_0 : i32
    scf.if %2 {
      %cst_13 = arith.constant 0.000000e+00 : f32
      %15 = vector.broadcast %cst_13 : f32 to vector<128x128xf32>
      %c0_14 = arith.constant 0 : index
      %c0_15 = arith.constant 0 : index
      %16 = vector.load %arg3[%c0_14, %c0_15] : memref<128x128xf32, #tpu.memory_space<vmem>>, vector<128x128xf32>
      tpu.vector_store %arg3[%c0_14, %c0_15], %15 {strides = array<i32>} : memref<128x128xf32, #tpu.memory_space<vmem>>, vector<128x128xf32>,
      %cst_16 = arith.constant 0.000000e+00 : f32
      %17 = vector.broadcast %cst_16 : f32 to vector<128x32xf32>
      %c0_17 = arith.constant 0 : index
      %c0_18 = arith.constant 0 : index
      %18 = vector.load %arg4[%c0_17, %c0_18] : memref<128x32xf32, #tpu.memory_space<vmem>>, vector<128x32xf32>
      tpu.vector_store %arg4[%c0_17, %c0_18], %17 {strides = array<i32>} : memref<128x32xf32, #tpu.memory_space<vmem>>, vector<128x32xf32>,
    } else {
    }
    %c0 = arith.constant 0 : index
    %c0_1 = arith.constant 0 : index
    %3 = vector.load %arg1[%c0, %c0_1] : memref<64x128xf32, #tpu.memory_space<vmem>>, vector<64x128xf32>
    %4 = arith.truncf %3 : vector<64x128xf32> to vector<64x128xbf16>
    %c0_2 = arith.constant 0 : index
    %c0_3 = arith.constant 0 : index
    %5 = vector.load %arg2[%c0_2, %c0_3] : memref<64x32xf32, #tpu.memory_space<vmem>>, vector<64x32xf32>
    %6 = arith.truncf %5 : vector<64x32xf32> to vector<64x32xbf16>
    %c0_4 = arith.constant 0 : index
    %c0_5 = arith.constant 0 : index
    %7 = vector.load %arg3[%c0_4, %c0_5] : memref<128x128xf32, #tpu.memory_space<vmem>>, vector<128x128xf32>
    %cst = arith.constant dense<0.000000e+00> : vector<128x128xf32>
    %8 = tpu.matmul %4, %4, %cst {dimension_numbers = #tpu.dot_dimension_numbers<[0], [0], [1], [1], [0, 1, 1, 1], [], []>} : vector<64x128xbf16>, vector<64x128xbf16>, vector<128x128xf32> -> vector<128x128xf32>
    %9 = arith.addf %7, %8 : vector<128x128xf32>
    %c0_6 = arith.constant 0 : index
    %c0_7 = arith.constant 0 : index
    %10 = vector.load %arg3[%c0_6, %c0_7] : memref<128x128xf32, #tpu.memory_space<vmem>>, vector<128x128xf32>
    tpu.vector_store %arg3[%c0_6, %c0_7], %9 {strides = array<i32>} : memref<128x128xf32, #tpu.memory_space<vmem>>, vector<128x128xf32>,
    %c0_8 = arith.constant 0 : index
    %c0_9 = arith.constant 0 : index
    %11 = vector.load %arg4[%c0_8, %c0_9] : memref<128x32xf32, #tpu.memory_space<vmem>>, vector<128x32xf32>
    %cst_10 = arith.constant dense<0.000000e+00> : vector<128x32xf32>
    %12 = tpu.matmul %4, %6, %cst_10 {dimension_numbers = #tpu.dot_dimension_numbers<[0], [0], [1], [1], [0, 1, 1, 1], [], []>} : vector<64x128xbf16>, vector<64x32xbf16>, vector<128x32xf32> -> vector<128x32xf32>
    %13 = arith.addf %11, %12 : vector<128x32xf32>
    %c0_11 = arith.constant 0 : index
    %c0_12 = arith.constant 0 : index
    %14 = vector.load %arg4[%c0_11, %c0_12] : memref<128x32xf32, #tpu.memory_space<vmem>>, vector<128x32xf32>
    tpu.vector_store %arg4[%c0_11, %c0_12], %13 {strides = array<i32>} : memref<128x32xf32, #tpu.memory_space<vmem>>, vector<128x32xf32>,
    return
  }
  func.func @transform_0(%arg0: i32) -> (i32, i32) {
    %c0_i32 = arith.constant 0 : i32
    %c0_i32_0 = arith.constant 0 : i32
    return %arg0, %c0_i32 : i32, i32
  }
  func.func @transform_1(%arg0: i32) -> (i32, i32) {
    %c0_i32 = arith.constant 0 : i32
    %c0_i32_0 = arith.constant 0 : i32
    return %arg0, %c0_i32 : i32, i32
  }
  func.func @transform_2(%arg0: i32) -> (i32, i32) {
    %c0_i32 = arith.constant 0 : i32
    %c0_i32_0 = arith.constant 0 : i32
    %c0_i32_1 = arith.constant 0 : i32
    return %c0_i32, %c0_i32_0 : i32, i32
  }
  func.func @transform_3(%arg0: i32) -> (i32, i32) {
    %c0_i32 = arith.constant 0 : i32
    %c0_i32_0 = arith.constant 0 : i32
    %c0_i32_1 = arith.constant 0 : i32
    return %c0_i32, %c0_i32_0 : i32, i32
  }
}

module attributes {stable_mosaic.version = 11 : i64} {
  func.func @_expand_kernel(%arg0: i32, %arg1: memref<64x128xf32, #tpu.memory_space<vmem>>, %arg2: memref<64x32xf32, #tpu.memory_space<vmem>>, %arg3: memref<128x96xbf16, #tpu.memory_space<vmem>>, %arg4: memref<1x96xf32, #tpu.memory_space<vmem>>, %arg5: memref<64x128xf32, #tpu.memory_space<vmem>>) attributes {dimension_semantics = [#tpu.dimension_semantics<parallel>], iteration_bounds = array<i64: 1>, scalar_prefetch = 0 : i64, scratch_operands = 0 : i64, tpu.core_type = #tpu.core_type<tc>, window_params = [{transform_indices = @transform_0, window_bounds = array<i64: 64, 128>}, {transform_indices = @transform_1, window_bounds = array<i64: 64, 32>}, {pipeline_mode = #tpu.pipeline_mode<synchronous>, transform_indices = @transform_2, window_bounds = array<i64: 128, 96>}, {pipeline_mode = #tpu.pipeline_mode<synchronous>, transform_indices = @transform_3, window_bounds = array<i64: 1, 96>}, {transform_indices = @transform_4, window_bounds = array<i64: 64, 128>}]} {
    %c0 = arith.constant 0 : index
    %c0_0 = arith.constant 0 : index
    %0 = vector.load %arg1[%c0, %c0_0] : memref<64x128xf32, #tpu.memory_space<vmem>>, vector<64x128xf32>
    %1 = arith.truncf %0 : vector<64x128xf32> to vector<64x128xbf16>
    %c0_1 = arith.constant 0 : index
    %c0_2 = arith.constant 0 : index
    %2 = vector.load %arg3[%c0_1, %c0_2] : memref<128x96xbf16, #tpu.memory_space<vmem>>, vector<128x96xbf16>
    %cst = arith.constant dense<0.000000e+00> : vector<64x96xf32>
    %3 = tpu.matmul %1, %2, %cst {dimension_numbers = #tpu.dot_dimension_numbers<[1], [0], [0], [1], [0, 0, 1, 1], [], []>} : vector<64x128xbf16>, vector<128x96xbf16>, vector<64x96xf32> -> vector<64x96xf32>
    %4 = math.tanh %3 : vector<64x96xf32>
    %c0_3 = arith.constant 0 : index
    %c0_4 = arith.constant 0 : index
    %5 = vector.load %arg4[%c0_3, %c0_4] : memref<1x96xf32, #tpu.memory_space<vmem>>, vector<1x96xf32>
    %6 = vector.broadcast %5 : vector<1x96xf32> to vector<64x96xf32>
    %7 = arith.mulf %4, %6 : vector<64x96xf32>
    %c0_5 = arith.constant 0 : index
    %c0_6 = arith.constant 0 : index
    %8 = vector.load %arg2[%c0_5, %c0_6] : memref<64x32xf32, #tpu.memory_space<vmem>>, vector<64x32xf32>
    %9 = tpu.concatenate %8, %7 in 1 : vector<64x32xf32>, vector<64x96xf32> -> vector<64x128xf32>
    %c0_7 = arith.constant 0 : index
    %c0_8 = arith.constant 0 : index
    %10 = vector.load %arg5[%c0_7, %c0_8] : memref<64x128xf32, #tpu.memory_space<vmem>>, vector<64x128xf32>
    tpu.vector_store %arg5[%c0_7, %c0_8], %9 {strides = array<i32>} : memref<64x128xf32, #tpu.memory_space<vmem>>, vector<64x128xf32>,
    return
  }
  func.func @transform_0(%arg0: i32) -> (i32, i32) {
    %c0_i32 = arith.constant 0 : i32
    %c0_i32_0 = arith.constant 0 : i32
    return %arg0, %c0_i32 : i32, i32
  }
  func.func @transform_1(%arg0: i32) -> (i32, i32) {
    %c0_i32 = arith.constant 0 : i32
    %c0_i32_0 = arith.constant 0 : i32
    return %arg0, %c0_i32 : i32, i32
  }
  func.func @transform_2(%arg0: i32) -> (i32, i32) {
    %c0_i32 = arith.constant 0 : i32
    %c0_i32_0 = arith.constant 0 : i32
    %c0_i32_1 = arith.constant 0 : i32
    return %c0_i32, %c0_i32_0 : i32, i32
  }
  func.func @transform_3(%arg0: i32) -> (i32, i32) {
    %c0_i32 = arith.constant 0 : i32
    %c0_i32_0 = arith.constant 0 : i32
    %c0_i32_1 = arith.constant 0 : i32
    return %c0_i32, %c0_i32_0 : i32, i32
  }
  func.func @transform_4(%arg0: i32) -> (i32, i32) {
    %c0_i32 = arith.constant 0 : i32
    %c0_i32_0 = arith.constant 0 : i32
    return %arg0, %c0_i32 : i32, i32
  }
}

</mosaic_0001>

<llo_original>
// kernel: sgnn_forward.4
$region0: #{sgnn_forward.4}
  #allocation0 [shape = 'u32[]', space=smem, size = 0x4, offset = 0x4, fixed_abs, tag = 'smem constant byte address 0x4 - core index']
  #allocation1 [shape = 'u32[72,128]{1,0:T(1,128)}', space=vmem, size = 0x9000, scoped, tag = 'internal scratch']
  %s0 = inlined_call_operand.vmem [shape: f32[64,128], index: 0, kind: input, shape index: {}]
  %s1 = inlined_call_operand.vmem [shape: f32[64,32], index: 1, kind: input, shape index: {}]
  %s2 = inlined_call_operand.vmem [shape: f32[128,128], index: 2, kind: output, shape index: {0}]
  %s3 = inlined_call_operand.vmem [shape: f32[128,32], index: 3, kind: output, shape index: {1}]
  %4 = xla_tuple %s2, %s3
  %s5 = sld [smem:[#allocation0]]
  $region30: #{sgnn_forward.4} parent=0
    _
  %s7 = ssub.s32 1, %s5
  %s8 = scalar_select 0, %s7, %s5
  // Predicated region
  $region2: #{sgnn_forward.4} parent=0 // pred_check
    _
  $region3: #{sgnn_forward.4} parent=0 // pred_check_branch
    %10 = sbr.rel (0) target = $region5
  $region4: #{sgnn_forward.4} parent=0 // pred_region
    _
  $region5: #{sgnn_forward.4} parent=0 // pred_fallthru
    _
  // Predicated region
  $region6: #{sgnn_forward.4} parent=0 // pred_check
    _
  $region7: #{sgnn_forward.4} parent=0 // pred_check_branch
    %12 = sbr.rel (0) target = $region9
  $region8: #{sgnn_forward.4} parent=0 // pred_region
    _
  $region9: #{sgnn_forward.4} parent=0 // pred_fallthru
    _
  %p14 = scmp.eq.s32.totalorder 0, 0
  // Predicated region
  $region10: #{sgnn_forward.4} parent=0 // pred_check
    %p15 = pneg %p14
  $region11: #{sgnn_forward.4} parent=0 // pred_check_branch
    %17 = sbr.rel (%p15) target = $region13
  $region12: #{sgnn_forward.4} parent=0 // pred_region
    %18 = vst [vmem:[%s2] sm:$0xff] 0.0
    %19 = vst [vmem:[%s2 + $0x8] sm:$0xff] 0.0
    %20 = vst [vmem:[%s2 + $0x10] sm:$0xff] 0.0
    %21 = vst [vmem:[%s2 + $0x18] sm:$0xff] 0.0
    %22 = vst [vmem:[%s2 + $0x20] sm:$0xff] 0.0
    %23 = vst [vmem:[%s2 + $0x28] sm:$0xff] 0.0
    %24 = vst [vmem:[%s2 + $0x30] sm:$0xff] 0.0
    %25 = vst [vmem:[%s2 + $0x38] sm:$0xff] 0.0
    %26 = vst [vmem:[%s2 + $0x40] sm:$0xff] 0.0
    %27 = vst [vmem:[%s2 + $0x48] sm:$0xff] 0.0
    %28 = vst [vmem:[%s2 + $0x50] sm:$0xff] 0.0
    %29 = vst [vmem:[%s2 + $0x58] sm:$0xff] 0.0
    %30 = vst [vmem:[%s2 + $0x60] sm:$0xff] 0.0
    %31 = vst [vmem:[%s2 + $0x68] sm:$0xff] 0.0
    %32 = vst [vmem:[%s2 + $0x70] sm:$0xff] 0.0
    %33 = vst [vmem:[%s2 + $0x78] sm:$0xff] 0.0
    %vm34 = vcmask 261120
    %35 = vst.msk [vmem:[%s3] sm:$0xff] %vm34, 0.0
    %36 = vst.msk [vmem:[%s3 + $0x8] sm:$0xff] %vm34, 0.0
    %37 = vst.msk [vmem:[%s3 + $0x10] sm:$0xff] %vm34, 0.0
    %38 = vst.msk [vmem:[%s3 + $0x18] sm:$0xff] %vm34, 0.0
    %39 = vst.msk [vmem:[%s3 + $0x20] sm:$0xff] %vm34, 0.0
    %40 = vst.msk [vmem:[%s3 + $0x28] sm:$0xff] %vm34, 0.0
    %41 = vst.msk [vmem:[%s3 + $0x30] sm:$0xff] %vm34, 0.0
    %42 = vst.msk [vmem:[%s3 + $0x38] sm:$0xff] %vm34, 0.0
    %43 = vst.msk [vmem:[%s3 + $0x40] sm:$0xff] %vm34, 0.0
    %44 = vst.msk [vmem:[%s3 + $0x48] sm:$0xff] %vm34, 0.0
    %45 = vst.msk [vmem:[%s3 + $0x50] sm:$0xff] %vm34, 0.0
    %46 = vst.msk [vmem:[%s3 + $0x58] sm:$0xff] %vm34, 0.0
    %47 = vst.msk [vmem:[%s3 + $0x60] sm:$0xff] %vm34, 0.0
    %48 = vst.msk [vmem:[%s3 + $0x68] sm:$0xff] %vm34, 0.0
    %49 = vst.msk [vmem:[%s3 + $0x70] sm:$0xff] %vm34, 0.0
    %50 = vst.msk [vmem:[%s3 + $0x78] sm:$0xff] %vm34, 0.0
  $region13: #{sgnn_forward.4} parent=0 // pred_fallthru
    _
  %v51 = vld [vmem:[%s0] sm:$0xff]
  %v52 = vld [vmem:[%s0 + $0x8] sm:$0xff]
  %v53 = vld [vmem:[%s0 + $0x10] sm:$0xff]
  %v54 = vld [vmem:[%s0 + $0x18] sm:$0xff]
  %v55 = vld [vmem:[%s0 + $0x20] sm:$0xff]
  %v56 = vld [vmem:[%s0 + $0x28] sm:$0xff]
  %v57 = vld [vmem:[%s0 + $0x30] sm:$0xff]
  %v58 = vld [vmem:[%s0 + $0x38] sm:$0xff]
  %v59 = vpack.c.bf16 %v52, %v51
  %v60 = vpack.c.bf16 %v54, %v53
  %v61 = vpack.c.bf16 %v56, %v55
  %v62 = vpack.c.bf16 %v58, %v57
  %v63 = vld [vmem:[%s1] sm:$0xff]
  %v64 = vld [vmem:[%s1 + $0x8] sm:$0xff]
  %v65 = vld [vmem:[%s1 + $0x10] sm:$0xff]
  %v66 = vld [vmem:[%s1 + $0x18] sm:$0xff]
  %v67 = vld [vmem:[%s1 + $0x20] sm:$0xff]
  %v68 = vld [vmem:[%s1 + $0x28] sm:$0xff]
  %v69 = vld [vmem:[%s1 + $0x30] sm:$0xff]
  %v70 = vld [vmem:[%s1 + $0x38] sm:$0xff]
  %v71 = vpack.c.bf16 %v64, %v63
  %v72 = vpack.c.bf16 %v66, %v65
  %v73 = vpack.c.bf16 %v68, %v67
  %v74 = vpack.c.bf16 %v70, %v69
  %v75 = vld [vmem:[%s2] sm:$0xff]
  %v76 = vld [vmem:[%s2 + $0x8] sm:$0xff]
  %v77 = vld [vmem:[%s2 + $0x10] sm:$0xff]
  %v78 = vld [vmem:[%s2 + $0x18] sm:$0xff]
  %v79 = vld [vmem:[%s2 + $0x20] sm:$0xff]
  %v80 = vld [vmem:[%s2 + $0x28] sm:$0xff]
  %v81 = vld [vmem:[%s2 + $0x30] sm:$0xff]
  %v82 = vld [vmem:[%s2 + $0x38] sm:$0xff]
  %v83 = vld [vmem:[%s2 + $0x40] sm:$0xff]
  %v84 = vld [vmem:[%s2 + $0x48] sm:$0xff]
  %v85 = vld [vmem:[%s2 + $0x50] sm:$0xff]
  %v86 = vld [vmem:[%s2 + $0x58] sm:$0xff]
  %v87 = vld [vmem:[%s2 + $0x60] sm:$0xff]
  %v88 = vld [vmem:[%s2 + $0x68] sm:$0xff]
  %v89 = vld [vmem:[%s2 + $0x70] sm:$0xff]
  %v90 = vld [vmem:[%s2 + $0x78] sm:$0xff]
  %91 = vxpose.xlu0.c.b16.start [1/8] %v59, 128
  %92 = vxpose.xlu0.c.b16.cont [2/8] %v60, 128
  %93 = vxpose.xlu0.c.b16.cont [3/8] %v61, 128
  %94 = vxpose.xlu0.c.b16.cont [4/8] %v62, 128
  %95 = vxpose.xlu0.c.b16.cont [5/8] 0, 128
  %96 = vxpose.xlu0.c.b16.cont [6/8] 0, 128
  %97 = vxpose.xlu0.c.b16.cont [7/8] 0, 128
  %98 = vxpose.xlu0.c.b16.end [8/8] 0, 128
  %v99 = vpop.trf.xlu0
  %v100 = vpop.trf.xlu0
  %v101 = vpop.trf.xlu0
  %v102 = vpop.trf.xlu0
  %v103 = vpop.trf.xlu0
  %v104 = vpop.trf.xlu0
  %v105 = vpop.trf.xlu0
  %v106 = vpop.trf.xlu0
  %vm107 = vcmask 523264
  %v109 = vsel %vm107, %v99, 0
  %v112 = vsel %vm107, %v100, 0
  %v115 = vsel %vm107, %v101, 0
  %v118 = vsel %vm107, %v102, 0
  %v121 = vsel %vm107, %v103, 0
  %v124 = vsel %vm107, %v104, 0
  %v127 = vsel %vm107, %v105, 0
  %v130 = vsel %vm107, %v106, 0
  %132 = vmatpush.bf16.msra.mxu0 0
  %133 = vmatpush.bf16.msra.mxu0 0
  %134 = vmatpush.bf16.msra.mxu0 0
  %135 = vmatpush.bf16.msra.mxu0 0
  %136 = vmatpush.bf16.msra.mxu0 %v62
  %137 = vmatpush.bf16.msra.mxu0 %v61
  %138 = vmatpush.bf16.msra.mxu0 %v60
  %139 = vmatpush.bf16.msra.mxu0 %v59
  %140 = vmatmul.bf16.gmra.mxu0 %v109
  %v141 = vpop.f32.mrf.mxu0
  %v142 = vadd.f32 0.0, %v141
  %v143 = vpop.f32.mrf.mxu0
  %v144 = vadd.f32 0.0, %v143
  %145 = vmatmul.bf16.gmra.mxu0 %v112
  %v146 = vpop.f32.mrf.mxu0
  %v147 = vadd.f32 0.0, %v146
  %v148 = vpop.f32.mrf.mxu0
  %v149 = vadd.f32 0.0, %v148
  %150 = vmatmul.bf16.gmra.mxu0 %v115
  %v151 = vpop.f32.mrf.mxu0
  %v152 = vadd.f32 0.0, %v151
  %v153 = vpop.f32.mrf.mxu0
  %v154 = vadd.f32 0.0, %v153
  %155 = vmatmul.bf16.gmra.mxu0 %v118
  %v156 = vpop.f32.mrf.mxu0
  %v157 = vadd.f32 0.0, %v156
  %v158 = vpop.f32.mrf.mxu0
  %v159 = vadd.f32 0.0, %v158
  %160 = vmatmul.bf16.gmra.mxu0 %v121
  %v161 = vpop.f32.mrf.mxu0
  %v162 = vadd.f32 0.0, %v161
  %v163 = vpop.f32.mrf.mxu0
  %v164 = vadd.f32 0.0, %v163
  %165 = vmatmul.bf16.gmra.mxu0 %v124
  %v166 = vpop.f32.mrf.mxu0
  %v167 = vadd.f32 0.0, %v166
  %v168 = vpop.f32.mrf.mxu0
  %v169 = vadd.f32 0.0, %v168
  %170 = vmatmul.bf16.gmra.mxu0 %v127
  %v171 = vpop.f32.mrf.mxu0
  %v172 = vadd.f32 0.0, %v171
  %v173 = vpop.f32.mrf.mxu0
  %v174 = vadd.f32 0.0, %v173
  %175 = vmatmul.bf16.gmra.mxu0 %v130
  %v176 = vpop.f32.mrf.mxu0
  %v177 = vadd.f32 0.0, %v176
  %v178 = vpop.f32.mrf.mxu0
  %v179 = vadd.f32 0.0, %v178
  %180 = vdwg.mxu0
  %v181 = vadd.f32 %v75, %v142
  %v182 = vadd.f32 %v76, %v144
  %v183 = vadd.f32 %v77, %v147
  %v184 = vadd.f32 %v78, %v149
  %v185 = vadd.f32 %v79, %v152
  %v186 = vadd.f32 %v80, %v154
  %v187 = vadd.f32 %v81, %v157
  %v188 = vadd.f32 %v82, %v159
  %v189 = vadd.f32 %v83, %v162
  %v190 = vadd.f32 %v84, %v164
  %v191 = vadd.f32 %v85, %v167
  %v192 = vadd.f32 %v86, %v169
  %v193 = vadd.f32 %v87, %v172
  %v194 = vadd.f32 %v88, %v174
  %v195 = vadd.f32 %v89, %v177
  %v196 = vadd.f32 %v90, %v179
  %197 = vst [vmem:[%s2] sm:$0xff] %v181
  %198 = vst [vmem:[%s2 + $0x8] sm:$0xff] %v182
  %199 = vst [vmem:[%s2 + $0x10] sm:$0xff] %v183
  %200 = vst [vmem:[%s2 + $0x18] sm:$0xff] %v184
  %201 = vst [vmem:[%s2 + $0x20] sm:$0xff] %v185
  %202 = vst [vmem:[%s2 + $0x28] sm:$0xff] %v186
  %203 = vst [vmem:[%s2 + $0x30] sm:$0xff] %v187
  %204 = vst [vmem:[%s2 + $0x38] sm:$0xff] %v188
  %205 = vst [vmem:[%s2 + $0x40] sm:$0xff] %v189
  %206 = vst [vmem:[%s2 + $0x48] sm:$0xff] %v190
  %207 = vst [vmem:[%s2 + $0x50] sm:$0xff] %v191
  %208 = vst [vmem:[%s2 + $0x58] sm:$0xff] %v192
  %209 = vst [vmem:[%s2 + $0x60] sm:$0xff] %v193
  %210 = vst [vmem:[%s2 + $0x68] sm:$0xff] %v194
  %211 = vst [vmem:[%s2 + $0x70] sm:$0xff] %v195
  %212 = vst [vmem:[%s2 + $0x78] sm:$0xff] %v196
  %v213 = vld [vmem:[%s3] sm:$0xff]
  %v214 = vld [vmem:[%s3 + $0x8] sm:$0xff]
  %v215 = vld [vmem:[%s3 + $0x10] sm:$0xff]
  %v216 = vld [vmem:[%s3 + $0x18] sm:$0xff]
  %v217 = vld [vmem:[%s3 + $0x20] sm:$0xff]
  %v218 = vld [vmem:[%s3 + $0x28] sm:$0xff]
  %v219 = vld [vmem:[%s3 + $0x30] sm:$0xff]
  %v220 = vld [vmem:[%s3 + $0x38] sm:$0xff]
  %v221 = vld [vmem:[%s3 + $0x40] sm:$0xff]
  %v222 = vld [vmem:[%s3 + $0x48] sm:$0xff]
  %v223 = vld [vmem:[%s3 + $0x50] sm:$0xff]
  %v224 = vld [vmem:[%s3 + $0x58] sm:$0xff]
  %v225 = vld [vmem:[%s3 + $0x60] sm:$0xff]
  %v226 = vld [vmem:[%s3 + $0x68] sm:$0xff]
  %v227 = vld [vmem:[%s3 + $0x70] sm:$0xff]
  %v228 = vld [vmem:[%s3 + $0x78] sm:$0xff]
  %229 = vmatpush.bf16.msra.mxu0 0
  %230 = vmatpush.bf16.msra.mxu0 0
  %231 = vmatpush.bf16.msra.mxu0 0
  %232 = vmatpush.bf16.msra.mxu0 0
  %233 = vmatpush.bf16.msra.mxu0 %v74
  %234 = vmatpush.bf16.msra.mxu0 %v73
  %235 = vmatpush.bf16.msra.mxu0 %v72
  %236 = vmatpush.bf16.msra.mxu0 %v71
  %237 = vmatmul.bf16.gmra.mxu0 %v109
  %v238 = vpop.f32.mrf.mxu0
  %v239 = vadd.f32 0.0, %v238
  %v240 = vpop.f32.mrf.mxu0
  %v241 = vadd.f32 0.0, %v240
  %242 = vmatmul.bf16.gmra.mxu0 %v112
  %v243 = vpop.f32.mrf.mxu0
  %v244 = vadd.f32 0.0, %v243
  %v245 = vpop.f32.mrf.mxu0
  %v246 = vadd.f32 0.0, %v245
  %247 = vmatmul.bf16.gmra.mxu0 %v115
  %v248 = vpop.f32.mrf.mxu0
  %v249 = vadd.f32 0.0, %v248
  %v250 = vpop.f32.mrf.mxu0
  %v251 = vadd.f32 0.0, %v250
  %252 = vmatmul.bf16.gmra.mxu0 %v118
  %v253 = vpop.f32.mrf.mxu0
  %v254 = vadd.f32 0.0, %v253
  %v255 = vpop.f32.mrf.mxu0
  %v256 = vadd.f32 0.0, %v255
  %257 = vmatmul.bf16.gmra.mxu0 %v121
  %v258 = vpop.f32.mrf.mxu0
  %v259 = vadd.f32 0.0, %v258
  %v260 = vpop.f32.mrf.mxu0
  %v261 = vadd.f32 0.0, %v260
  %262 = vmatmul.bf16.gmra.mxu0 %v124
  %v263 = vpop.f32.mrf.mxu0
  %v264 = vadd.f32 0.0, %v263
  %v265 = vpop.f32.mrf.mxu0
  %v266 = vadd.f32 0.0, %v265
  %267 = vmatmul.bf16.gmra.mxu0 %v127
  %v268 = vpop.f32.mrf.mxu0
  %v269 = vadd.f32 0.0, %v268
  %v270 = vpop.f32.mrf.mxu0
  %v271 = vadd.f32 0.0, %v270
  %272 = vmatmul.bf16.gmra.mxu0 %v130
  %v273 = vpop.f32.mrf.mxu0
  %v274 = vadd.f32 0.0, %v273
  %v275 = vpop.f32.mrf.mxu0
  %v276 = vadd.f32 0.0, %v275
  %277 = vdwg.mxu0
  %v278 = vadd.f32 %v213, %v239
  %v279 = vadd.f32 %v214, %v241
  %v280 = vadd.f32 %v215, %v244
  %v281 = vadd.f32 %v216, %v246
  %v282 = vadd.f32 %v217, %v249
  %v283 = vadd.f32 %v218, %v251
  %v284 = vadd.f32 %v219, %v254
  %v285 = vadd.f32 %v220, %v256
  %v286 = vadd.f32 %v221, %v259
  %v287 = vadd.f32 %v222, %v261
  %v288 = vadd.f32 %v223, %v264
  %v289 = vadd.f32 %v224, %v266
  %v290 = vadd.f32 %v225, %v269
  %v291 = vadd.f32 %v226, %v271
  %v292 = vadd.f32 %v227, %v274
  %v293 = vadd.f32 %v228, %v276
  %vm294 = vcmask 261120
  %295 = vst.msk [vmem:[%s3] sm:$0xff] %vm294, %v278
  %296 = vst.msk [vmem:[%s3 + $0x8] sm:$0xff] %vm294, %v279
  %297 = vst.msk [vmem:[%s3 + $0x10] sm:$0xff] %vm294, %v280
  %298 = vst.msk [vmem:[%s3 + $0x18] sm:$0xff] %vm294, %v281
  %299 = vst.msk [vmem:[%s3 + $0x20] sm:$0xff] %vm294, %v282
  %300 = vst.msk [vmem:[%s3 + $0x28] sm:$0xff] %vm294, %v283
  %301 = vst.msk [vmem:[%s3 + $0x30] sm:$0xff] %vm294, %v284
  %302 = vst.msk [vmem:[%s3 + $0x38] sm:$0xff] %vm294, %v285
  %303 = vst.msk [vmem:[%s3 + $0x40] sm:$0xff] %vm294, %v286
  %304 = vst.msk [vmem:[%s3 + $0x48] sm:$0xff] %vm294, %v287
  %305 = vst.msk [vmem:[%s3 + $0x50] sm:$0xff] %vm294, %v288
  %306 = vst.msk [vmem:[%s3 + $0x58] sm:$0xff] %vm294, %v289
  %307 = vst.msk [vmem:[%s3 + $0x60] sm:$0xff] %vm294, %v290
  %308 = vst.msk [vmem:[%s3 + $0x68] sm:$0xff] %vm294, %v291
  %309 = vst.msk [vmem:[%s3 + $0x70] sm:$0xff] %vm294, %v292
  %310 = vst.msk [vmem:[%s3 + $0x78] sm:$0xff] %vm294, %v293
  // Predicated region
  $region14: #{sgnn_forward.4} parent=0 // pred_check
    _
  $region15: #{sgnn_forward.4} parent=0 // pred_check_branch
    %312 = sbr.rel (0) target = $region17
  $region16: #{sgnn_forward.4} parent=0 // pred_region
    _
  $region17: #{sgnn_forward.4} parent=0 // pred_fallthru
    _
  // Predicated region
  $region18: #{sgnn_forward.4} parent=0 // pred_check
    _
  $region19: #{sgnn_forward.4} parent=0 // pred_check_branch
    %314 = sbr.rel (0) target = $region21
  $region20: #{sgnn_forward.4} parent=0 // pred_region
    _
  $region21: #{sgnn_forward.4} parent=0 // pred_fallthru
    _
  // Predicated region
  $region22: #{sgnn_forward.4} parent=0 // pred_check
    _
  $region23: #{sgnn_forward.4} parent=0 // pred_check_branch
    %316 = sbr.rel (0) target = $region25
  $region24: #{sgnn_forward.4} parent=0 // pred_region
    _
  $region25: #{sgnn_forward.4} parent=0 // pred_fallthru
    _
  // Predicated region
  $region26: #{sgnn_forward.4} parent=0 // pred_check
    _
  $region27: #{sgnn_forward.4} parent=0 // pred_check_branch
    %318 = sbr.rel (0) target = $region29
  $region28: #{sgnn_forward.4} parent=0 // pred_region
    _
  $region29: #{sgnn_forward.4} parent=0 // pred_fallthru
    _

// kernel: sgnn_forward.7
$region0: #{sgnn_forward.7}
  #allocation0 [shape = 'u32[]', space=smem, size = 0x4, offset = 0x4, fixed_abs, tag = 'smem constant byte address 0x4 - core index']
  #allocation1 [shape = 'u32[72,128]{1,0:T(1,128)}', space=vmem, size = 0x9000, scoped, tag = 'internal scratch']
  %s0 = inlined_call_operand.vmem [shape: f32[64,128], index: 0, kind: input, shape index: {}]
  %s1 = inlined_call_operand.vmem [shape: f32[64,32], index: 1, kind: input, shape index: {}]
  %s2 = inlined_call_operand.vmem [shape: bf16[128,96], index: 2, kind: input, shape index: {}]
  %s3 = inlined_call_operand.vmem [shape: f32[1,96], index: 3, kind: input, shape index: {}]
  %s4 = inlined_call_operand.hbm [shape: f32[64,128], index: 4, kind: output, shape index: {}]
  %s5 = sld [smem:[#allocation0]]
  $region26: #{sgnn_forward.7} parent=0
    _
  %s7 = ssub.s32 1, %s5
  %s8 = scalar_select 0, %s7, %s5
  $region1: #{sgnn_forward.7} parent=0
    #allocation2 [shape = 'u8[32768]{0}', space=vmem, size = 0x8000, scoped, tag = 'output window, operand 0, single buffered']
    #allocation3 [shape = 's32[1]{0}', space=sflag, size = 0x4, scoped, tag = 'scoped memory for sgnn_forward.7']
    %9 = vsyncpa [#allocation3], 0
    // Predicated region
    $region2: #{sgnn_forward.7} parent=1 // pred_check
      _
    $region3: #{sgnn_forward.7} parent=1 // pred_check_branch
      %11 = sbr.rel (0) target = $region5
    $region4: #{sgnn_forward.7} parent=1 // pred_region
      _
    $region5: #{sgnn_forward.7} parent=1 // pred_fallthru
      _
    // Predicated region
    $region6: #{sgnn_forward.7} parent=1 // pred_check
      _
    $region7: #{sgnn_forward.7} parent=1 // pred_check_branch
      %13 = sbr.rel (0) target = $region9
    $region8: #{sgnn_forward.7} parent=1 // pred_region
      _
    $region9: #{sgnn_forward.7} parent=1 // pred_fallthru
      _
    // Predicated region
    $region10: #{sgnn_forward.7} parent=1 // pred_check
      _
    $region11: #{sgnn_forward.7} parent=1 // pred_check_branch
      %15 = sbr.rel (0) target = $region13
    $region12: #{sgnn_forward.7} parent=1 // pred_region
      _
    $region13: #{sgnn_forward.7} parent=1 // pred_fallthru
      _
    // Predicated region
    $region14: #{sgnn_forward.7} parent=1 // pred_check
      _
    $region15: #{sgnn_forward.7} parent=1 // pred_check_branch
      %17 = sbr.rel (0) target = $region17
    $region16: #{sgnn_forward.7} parent=1 // pred_region
      _
    $region17: #{sgnn_forward.7} parent=1 // pred_fallthru
      _
    %v18 = vld [vmem:[%s0] sm:$0xff]
    %v19 = vld [vmem:[%s0 + $0x8] sm:$0xff]
    %v20 = vld [vmem:[%s0 + $0x10] sm:$0xff]
    %v21 = vld [vmem:[%s0 + $0x18] sm:$0xff]
    %v22 = vld [vmem:[%s0 + $0x20] sm:$0xff]
    %v23 = vld [vmem:[%s0 + $0x28] sm:$0xff]
    %v24 = vld [vmem:[%s0 + $0x30] sm:$0xff]
    %v25 = vld [vmem:[%s0 + $0x38] sm:$0xff]
    %v26 = vpack.c.bf16 %v19, %v18
    %v27 = vpack.c.bf16 %v21, %v20
    %v28 = vpack.c.bf16 %v23, %v22
    %v29 = vpack.c.bf16 %v25, %v24
    %v30 = vld [vmem:[%s2] sm:$0xf]
    %v31 = vld [vmem:[%s2 + $0x4] sm:$0xf]
    %v32 = vld [vmem:[%s2 + $0x8] sm:$0xf]
    %v33 = vld [vmem:[%s2 + $0xc] sm:$0xf]
    %v34 = vld [vmem:[%s2 + $0x10] sm:$0xf]
    %v35 = vld [vmem:[%s2 + $0x14] sm:$0xf]
    %v36 = vld [vmem:[%s2 + $0x18] sm:$0xf]
    %v37 = vld [vmem:[%s2 + $0x1c] sm:$0xf]
    %v38 = vld [vmem:[%s2 + $0x20] sm:$0xf]
    %v39 = vld [vmem:[%s2 + $0x24] sm:$0xf]
    %v40 = vld [vmem:[%s2 + $0x28] sm:$0xf]
    %v41 = vld [vmem:[%s2 + $0x2c] sm:$0xf]
    %v42 = vld [vmem:[%s2 + $0x30] sm:$0xf]
    %v43 = vld [vmem:[%s2 + $0x34] sm:$0xf]
    %v44 = vld [vmem:[%s2 + $0x38] sm:$0xf]
    %v45 = vld [vmem:[%s2 + $0x3c] sm:$0xf]
    %v62 = vunpack.c.l.b16 %v30
    %v63 = vunpack.c.l.b16 %v31
    %v64 = vunpack.c.l.b16 %v32
    %v65 = vunpack.c.l.b16 %v33
    %v66 = vunpack.c.l.b16 %v34
    %v67 = vunpack.c.l.b16 %v35
    %v68 = vunpack.c.l.b16 %v36
    %v69 = vunpack.c.l.b16 %v37
    %v70 = vunpack.c.l.b16 %v38
    %v71 = vunpack.c.l.b16 %v39
    %v72 = vunpack.c.l.b16 %v40
    %v73 = vunpack.c.l.b16 %v41
    %v74 = vunpack.c.l.b16 %v42
    %v75 = vunpack.c.l.b16 %v43
    %v76 = vunpack.c.l.b16 %v44
    %v77 = vunpack.c.l.b16 %v45
    %v78 = vpack.c.b16 %v63, %v62
    %v79 = vpack.c.b16 %v65, %v64
    %v80 = vpack.c.b16 %v67, %v66
    %v81 = vpack.c.b16 %v69, %v68
    %v82 = vpack.c.b16 %v71, %v70
    %v83 = vpack.c.b16 %v73, %v72
    %v84 = vpack.c.b16 %v75, %v74
    %v85 = vpack.c.b16 %v77, %v76
    %94 = vmatpush.bf16.msra.mxu0 %v85
    %95 = vmatpush.bf16.msra.mxu0 %v84
    %96 = vmatpush.bf16.msra.mxu0 %v83
    %97 = vmatpush.bf16.msra.mxu0 %v82
    %98 = vmatpush.bf16.msra.mxu0 %v81
    %99 = vmatpush.bf16.msra.mxu0 %v80
    %100 = vmatpush.bf16.msra.mxu0 %v79
    %101 = vmatpush.bf16.msra.mxu0 %v78
    %102 = vmatmul.bf16.gmra.mxu0 %v26
    %v103 = vpop.f32.mrf.mxu0
    %v104 = vadd.f32 0.0, %v103
    %v105 = vpop.f32.mrf.mxu0
    %v106 = vadd.f32 0.0, %v105
    %107 = vmatmul.bf16.gmra.mxu0 %v27
    %v108 = vpop.f32.mrf.mxu0
    %v109 = vadd.f32 0.0, %v108
    %v110 = vpop.f32.mrf.mxu0
    %v111 = vadd.f32 0.0, %v110
    %112 = vmatmul.bf16.gmra.mxu0 %v28
    %v113 = vpop.f32.mrf.mxu0
    %v114 = vadd.f32 0.0, %v113
    %v115 = vpop.f32.mrf.mxu0
    %v116 = vadd.f32 0.0, %v115
    %117 = vmatmul.bf16.gmra.mxu0 %v29
    %v118 = vpop.f32.mrf.mxu0
    %v119 = vadd.f32 0.0, %v118
    %v120 = vpop.f32.mrf.mxu0
    %v121 = vadd.f32 0.0, %v120
    %122 = vdwg.mxu0
    %v123 = vtanh.pop %v104
    %v124 = vtanh.pop %v106
    %v125 = vtanh.pop %v109
    %v126 = vtanh.pop %v111
    %v127 = vtanh.pop %v114
    %v128 = vtanh.pop %v116
    %v129 = vtanh.pop %v119
    %v130 = vtanh.pop %v121
    %v131 = vld [vmem:[%s3] sm:$0x1]
    %v133 = vperm.slane %v131, 0
    %v135 = vmul.f32 %v123, %v133
    %v136 = vmul.f32 %v124, %v133
    %v137 = vmul.f32 %v125, %v133
    %v138 = vmul.f32 %v126, %v133
    %v139 = vmul.f32 %v127, %v133
    %v140 = vmul.f32 %v128, %v133
    %v141 = vmul.f32 %v129, %v133
    %v142 = vmul.f32 %v130, %v133
    %v143 = vld [vmem:[%s1] sm:$0xff]
    %v144 = vld [vmem:[%s1 + $0x8] sm:$0xff]
    %v145 = vld [vmem:[%s1 + $0x10] sm:$0xff]
    %v146 = vld [vmem:[%s1 + $0x18] sm:$0xff]
    %v147 = vld [vmem:[%s1 + $0x20] sm:$0xff]
    %v148 = vld [vmem:[%s1 + $0x28] sm:$0xff]
    %v149 = vld [vmem:[%s1 + $0x30] sm:$0xff]
    %v150 = vld [vmem:[%s1 + $0x38] sm:$0xff]
    %159 = vrot.lane.b32.xlu0 %v135, 32
    %v160 = vpop.permute.xlu0 %159
    %161 = vrot.lane.b32.xlu0 %v136, 32
    %v162 = vpop.permute.xlu0 %161
    %163 = vrot.lane.b32.xlu0 %v137, 32
    %v164 = vpop.permute.xlu0 %163
    %165 = vrot.lane.b32.xlu0 %v138, 32
    %v166 = vpop.permute.xlu0 %165
    %167 = vrot.lane.b32.xlu0 %v139, 32
    %v168 = vpop.permute.xlu0 %167
    %169 = vrot.lane.b32.xlu0 %v140, 32
    %v170 = vpop.permute.xlu0 %169
    %171 = vrot.lane.b32.xlu0 %v141, 32
    %v172 = vpop.permute.xlu0 %171
    %173 = vrot.lane.b32.xlu0 %v142, 32
    %v174 = vpop.permute.xlu0 %173
    %vm183 = vcmask 261120
    %v184 = vsel %vm183, %v143, %v160
    %v185 = vsel %vm183, %v144, %v162
    %v186 = vsel %vm183, %v145, %v164
    %v187 = vsel %vm183, %v146, %v166
    %v188 = vsel %vm183, %v147, %v168
    %v189 = vsel %vm183, %v148, %v170
    %v190 = vsel %vm183, %v149, %v172
    %v191 = vsel %vm183, %v150, %v174
    %192 = vst [vmem:[#allocation2] sm:$0xff] %v184
    %193 = vst [vmem:[#allocation2 + $0x8] sm:$0xff] %v185
    %194 = vst [vmem:[#allocation2 + $0x10] sm:$0xff] %v186
    %195 = vst [vmem:[#allocation2 + $0x18] sm:$0xff] %v187
    %196 = vst [vmem:[#allocation2 + $0x20] sm:$0xff] %v188
    %197 = vst [vmem:[#allocation2 + $0x28] sm:$0xff] %v189
    %198 = vst [vmem:[#allocation2 + $0x30] sm:$0xff] %v190
    %199 = vst [vmem:[#allocation2 + $0x38] sm:$0xff] %v191
    // Predicated region
    $region18: #{sgnn_forward.7} parent=1 // pred_check
      _
    $region19: #{sgnn_forward.7} parent=1 // pred_check_branch
      %201 = sbr.rel (0) target = $region21
    $region20: #{sgnn_forward.7} parent=1 // pred_region
      %203 = vsyncadd [#allocation3], 0
      %s204 = sshll.u32 [#allocation2], 4
      %s205 = int_to_ptr.vmem [resolvable:$true] %s204
      %s206 = sshll.u32 %s4, 4
      %s207 = int_to_ptr.hbm [resolvable:$true] %s206
      %212 = dma.vmem_to_hbm [thread:$0]  %s205, 1024, %s207, [#allocation3], 128, 128, 8
    $region21: #{sgnn_forward.7} parent=1 // pred_fallthru
      _
    // Predicated region
    $region22: #{sgnn_forward.7} parent=1 // pred_check
      _
    $region23: #{sgnn_forward.7} parent=1 // pred_check_branch
      %214 = sbr.rel (0) target = $region25
    $region24: #{sgnn_forward.7} parent=1 // pred_region
      %216 = dma.done [#allocation3], 1024
    $region25: #{sgnn_forward.7} parent=1 // pred_fallthru
      _
    %217 = vsyncpa [#allocation3], 1

// kernel: sgnn_forward.5
$region0: #{sgnn_forward.5}
  #allocation0 [shape = 'u32[]', space=smem, size = 0x4, offset = 0x4, fixed_abs, tag = 'smem constant byte address 0x4 - core index']
  #allocation1 [shape = 'u32[72,128]{1,0:T(1,128)}', space=vmem, size = 0x9000, scoped, tag = 'internal scratch']
  #allocation2 [shape = 'f32[128,128]{1,0:T(8,128)}', space=vmem, size = 0x10000, scoped, tag = 'scratch operand']
  #allocation3 [shape = 'f32[128,32]{1,0:T(8,128)}', space=vmem, size = 0x10000, scoped, tag = 'scratch operand']
  %s0 = inlined_call_operand.vmem [shape: f32[64,128], index: 0, kind: input, shape index: {}]
  %s1 = inlined_call_operand.vmem [shape: f32[64,32], index: 1, kind: input, shape index: {}]
  %s2 = inlined_call_operand.vmem [shape: f32[128,128], index: 2, kind: input, shape index: {}]
  %s3 = inlined_call_operand.vmem [shape: f32[128,32], index: 3, kind: input, shape index: {}]
  %s4 = inlined_call_operand.vmem [shape: bf16[128,96], index: 4, kind: output, shape index: {}]
  %s5 = sld [smem:[#allocation0]]
  $region34: #{sgnn_forward.5} parent=0
    _
  %s7 = ssub.s32 1, %s5
  %s8 = scalar_select 0, %s7, %s5
  // Predicated region
  $region2: #{sgnn_forward.5} parent=0 // pred_check
    _
  $region3: #{sgnn_forward.5} parent=0 // pred_check_branch
    %10 = sbr.rel (0) target = $region5
  $region4: #{sgnn_forward.5} parent=0 // pred_region
    _
  $region5: #{sgnn_forward.5} parent=0 // pred_fallthru
    _
  // Predicated region
  $region6: #{sgnn_forward.5} parent=0 // pred_check
    _
  $region7: #{sgnn_forward.5} parent=0 // pred_check_branch
    %12 = sbr.rel (0) target = $region9
  $region8: #{sgnn_forward.5} parent=0 // pred_region
    _
  $region9: #{sgnn_forward.5} parent=0 // pred_fallthru
    _
  // Predicated region
  $region10: #{sgnn_forward.5} parent=0 // pred_check
    _
  $region11: #{sgnn_forward.5} parent=0 // pred_check_branch
    %14 = sbr.rel (0) target = $region13
  $region12: #{sgnn_forward.5} parent=0 // pred_region
    _
  $region13: #{sgnn_forward.5} parent=0 // pred_fallthru
    _
  // Predicated region
  $region14: #{sgnn_forward.5} parent=0 // pred_check
    _
  $region15: #{sgnn_forward.5} parent=0 // pred_check_branch
    %16 = sbr.rel (0) target = $region17
  $region16: #{sgnn_forward.5} parent=0 // pred_region
    _
  $region17: #{sgnn_forward.5} parent=0 // pred_fallthru
    _
  %p18 = scmp.eq.s32.totalorder 0, 0
  // Predicated region
  $region18: #{sgnn_forward.5} parent=0 // pred_check
    %p19 = pneg %p18
  $region19: #{sgnn_forward.5} parent=0 // pred_check_branch
    %21 = sbr.rel (%p19) target = $region21
  $region20: #{sgnn_forward.5} parent=0 // pred_region
    %v22 = vld [vmem:[%s2] sm:$0xff]
    %v23 = vld [vmem:[%s2 + $0x8] sm:$0xff]
    %v24 = vld [vmem:[%s2 + $0x10] sm:$0xff]
    %v25 = vld [vmem:[%s2 + $0x18] sm:$0xff]
    %v26 = vld [vmem:[%s2 + $0x20] sm:$0xff]
    %v27 = vld [vmem:[%s2 + $0x28] sm:$0xff]
    %v28 = vld [vmem:[%s2 + $0x30] sm:$0xff]
    %v29 = vld [vmem:[%s2 + $0x38] sm:$0xff]
    %v30 = vld [vmem:[%s2 + $0x40] sm:$0xff]
    %v31 = vld [vmem:[%s2 + $0x48] sm:$0xff]
    %v32 = vld [vmem:[%s2 + $0x50] sm:$0xff]
    %v33 = vld [vmem:[%s2 + $0x58] sm:$0xff]
    %v34 = vld [vmem:[%s2 + $0x60] sm:$0xff]
    %v35 = vld [vmem:[%s2 + $0x68] sm:$0xff]
    %v36 = vld [vmem:[%s2 + $0x70] sm:$0xff]
    %v37 = vld [vmem:[%s2 + $0x78] sm:$0xff]
    %38 = vst [vmem:[#allocation2] sm:$0xff] %v22
    %39 = vst [vmem:[#allocation2 + $0x8] sm:$0xff] %v23
    %40 = vst [vmem:[#allocation2 + $0x10] sm:$0xff] %v24
    %41 = vst [vmem:[#allocation2 + $0x18] sm:$0xff] %v25
    %42 = vst [vmem:[#allocation2 + $0x20] sm:$0xff] %v26
    %43 = vst [vmem:[#allocation2 + $0x28] sm:$0xff] %v27
    %44 = vst [vmem:[#allocation2 + $0x30] sm:$0xff] %v28
    %45 = vst [vmem:[#allocation2 + $0x38] sm:$0xff] %v29
    %46 = vst [vmem:[#allocation2 + $0x40] sm:$0xff] %v30
    %47 = vst [vmem:[#allocation2 + $0x48] sm:$0xff] %v31
    %48 = vst [vmem:[#allocation2 + $0x50] sm:$0xff] %v32
    %49 = vst [vmem:[#allocation2 + $0x58] sm:$0xff] %v33
    %50 = vst [vmem:[#allocation2 + $0x60] sm:$0xff] %v34
    %51 = vst [vmem:[#allocation2 + $0x68] sm:$0xff] %v35
    %52 = vst [vmem:[#allocation2 + $0x70] sm:$0xff] %v36
    %53 = vst [vmem:[#allocation2 + $0x78] sm:$0xff] %v37
    %v54 = vld [vmem:[%s3] sm:$0xff]
    %v55 = vld [vmem:[%s3 + $0x8] sm:$0xff]
    %v56 = vld [vmem:[%s3 + $0x10] sm:$0xff]
    %v57 = vld [vmem:[%s3 + $0x18] sm:$0xff]
    %v58 = vld [vmem:[%s3 + $0x20] sm:$0xff]
    %v59 = vld [vmem:[%s3 + $0x28] sm:$0xff]
    %v60 = vld [vmem:[%s3 + $0x30] sm:$0xff]
    %v61 = vld [vmem:[%s3 + $0x38] sm:$0xff]
    %v62 = vld [vmem:[%s3 + $0x40] sm:$0xff]
    %v63 = vld [vmem:[%s3 + $0x48] sm:$0xff]
    %v64 = vld [vmem:[%s3 + $0x50] sm:$0xff]
    %v65 = vld [vmem:[%s3 + $0x58] sm:$0xff]
    %v66 = vld [vmem:[%s3 + $0x60] sm:$0xff]
    %v67 = vld [vmem:[%s3 + $0x68] sm:$0xff]
    %v68 = vld [vmem:[%s3 + $0x70] sm:$0xff]
    %v69 = vld [vmem:[%s3 + $0x78] sm:$0xff]
    %vm70 = vcmask 261120
    %71 = vst.msk [vmem:[#allocation3] sm:$0xff] %vm70, %v54
    %72 = vst.msk [vmem:[#allocation3 + $0x8] sm:$0xff] %vm70, %v55
    %73 = vst.msk [vmem:[#allocation3 + $0x10] sm:$0xff] %vm70, %v56
    %74 = vst.msk [vmem:[#allocation3 + $0x18] sm:$0xff] %vm70, %v57
    %75 = vst.msk [vmem:[#allocation3 + $0x20] sm:$0xff] %vm70, %v58
    %76 = vst.msk [vmem:[#allocation3 + $0x28] sm:$0xff] %vm70, %v59
    %77 = vst.msk [vmem:[#allocation3 + $0x30] sm:$0xff] %vm70, %v60
    %78 = vst.msk [vmem:[#allocation3 + $0x38] sm:$0xff] %vm70, %v61
    %79 = vst.msk [vmem:[#allocation3 + $0x40] sm:$0xff] %vm70, %v62
    %80 = vst.msk [vmem:[#allocation3 + $0x48] sm:$0xff] %vm70, %v63
    %81 = vst.msk [vmem:[#allocation3 + $0x50] sm:$0xff] %vm70, %v64
    %82 = vst.msk [vmem:[#allocation3 + $0x58] sm:$0xff] %vm70, %v65
    %83 = vst.msk [vmem:[#allocation3 + $0x60] sm:$0xff] %vm70, %v66
    %84 = vst.msk [vmem:[#allocation3 + $0x68] sm:$0xff] %vm70, %v67
    %85 = vst.msk [vmem:[#allocation3 + $0x70] sm:$0xff] %vm70, %v68
    %86 = vst.msk [vmem:[#allocation3 + $0x78] sm:$0xff] %vm70, %v69
  $region21: #{sgnn_forward.5} parent=0 // pred_fallthru
    _
  %v87 = vld [vmem:[%s0] sm:$0xff]
  %v88 = vld [vmem:[%s0 + $0x8] sm:$0xff]
  %v89 = vld [vmem:[%s0 + $0x10] sm:$0xff]
  %v90 = vld [vmem:[%s0 + $0x18] sm:$0xff]
  %v91 = vld [vmem:[%s0 + $0x20] sm:$0xff]
  %v92 = vld [vmem:[%s0 + $0x28] sm:$0xff]
  %v93 = vld [vmem:[%s0 + $0x30] sm:$0xff]
  %v94 = vld [vmem:[%s0 + $0x38] sm:$0xff]
  %v95 = vpack.c.bf16 %v88, %v87
  %v96 = vpack.c.bf16 %v90, %v89
  %v97 = vpack.c.bf16 %v92, %v91
  %v98 = vpack.c.bf16 %v94, %v93
  %v99 = vld [vmem:[%s1] sm:$0xff]
  %v100 = vld [vmem:[%s1 + $0x8] sm:$0xff]
  %v101 = vld [vmem:[%s1 + $0x10] sm:$0xff]
  %v102 = vld [vmem:[%s1 + $0x18] sm:$0xff]
  %v103 = vld [vmem:[%s1 + $0x20] sm:$0xff]
  %v104 = vld [vmem:[%s1 + $0x28] sm:$0xff]
  %v105 = vld [vmem:[%s1 + $0x30] sm:$0xff]
  %v106 = vld [vmem:[%s1 + $0x38] sm:$0xff]
  %v107 = vpack.c.bf16 %v100, %v99
  %v108 = vpack.c.bf16 %v102, %v101
  %v109 = vpack.c.bf16 %v104, %v103
  %v110 = vpack.c.bf16 %v106, %v105
  %v111 = vld [vmem:[#allocation2] sm:$0xff]
  %v112 = vld [vmem:[#allocation2 + $0x8] sm:$0xff]
  %v113 = vld [vmem:[#allocation2 + $0x10] sm:$0xff]
  %v114 = vld [vmem:[#allocation2 + $0x18] sm:$0xff]
  %v115 = vld [vmem:[#allocation2 + $0x20] sm:$0xff]
  %v116 = vld [vmem:[#allocation2 + $0x28] sm:$0xff]
  %v117 = vld [vmem:[#allocation2 + $0x30] sm:$0xff]
  %v118 = vld [vmem:[#allocation2 + $0x38] sm:$0xff]
  %v119 = vld [vmem:[#allocation2 + $0x40] sm:$0xff]
  %v120 = vld [vmem:[#allocation2 + $0x48] sm:$0xff]
  %v121 = vld [vmem:[#allocation2 + $0x50] sm:$0xff]
  %v122 = vld [vmem:[#allocation2 + $0x58] sm:$0xff]
  %v123 = vld [vmem:[#allocation2 + $0x60] sm:$0xff]
  %v124 = vld [vmem:[#allocation2 + $0x68] sm:$0xff]
  %v125 = vld [vmem:[#allocation2 + $0x70] sm:$0xff]
  %v126 = vld [vmem:[#allocation2 + $0x78] sm:$0xff]
  %127 = vxpose.xlu0.c.b16.start [1/8] %v95, 128
  %128 = vxpose.xlu0.c.b16.cont [2/8] %v96, 128
  %129 = vxpose.xlu0.c.b16.cont [3/8] %v97, 128
  %130 = vxpose.xlu0.c.b16.cont [4/8] %v98, 128
  %131 = vxpose.xlu0.c.b16.cont [5/8] 0, 128
  %132 = vxpose.xlu0.c.b16.cont [6/8] 0, 128
  %133 = vxpose.xlu0.c.b16.cont [7/8] 0, 128
  %134 = vxpose.xlu0.c.b16.end [8/8] 0, 128
  %v135 = vpop.trf.xlu0
  %v136 = vpop.trf.xlu0
  %v137 = vpop.trf.xlu0
  %v138 = vpop.trf.xlu0
  %v139 = vpop.trf.xlu0
  %v140 = vpop.trf.xlu0
  %v141 = vpop.trf.xlu0
  %v142 = vpop.trf.xlu0
  %vm143 = vcmask 523264
  %v145 = vsel %vm143, %v135, 0
  %v148 = vsel %vm143, %v136, 0
  %v151 = vsel %vm143, %v137, 0
  %v154 = vsel %vm143, %v138, 0
  %v157 = vsel %vm143, %v139, 0
  %v160 = vsel %vm143, %v140, 0
  %v163 = vsel %vm143, %v141, 0
  %v166 = vsel %vm143, %v142, 0
  %168 = vmatpush.bf16.msra.mxu0 0
  %169 = vmatpush.bf16.msra.mxu0 0
  %170 = vmatpush.bf16.msra.mxu0 0
  %171 = vmatpush.bf16.msra.mxu0 0
  %172 = vmatpush.bf16.msra.mxu0 %v98
  %173 = vmatpush.bf16.msra.mxu0 %v97
  %174 = vmatpush.bf16.msra.mxu0 %v96
  %175 = vmatpush.bf16.msra.mxu0 %v95
  %176 = vmatmul.bf16.gmra.mxu0 %v145
  %v177 = vpop.f32.mrf.mxu0
  %v178 = vadd.f32 0.0, %v177
  %v179 = vpop.f32.mrf.mxu0
  %v180 = vadd.f32 0.0, %v179
  %181 = vmatmul.bf16.gmra.mxu0 %v148
  %v182 = vpop.f32.mrf.mxu0
  %v183 = vadd.f32 0.0, %v182
  %v184 = vpop.f32.mrf.mxu0
  %v185 = vadd.f32 0.0, %v184
  %186 = vmatmul.bf16.gmra.mxu0 %v151
  %v187 = vpop.f32.mrf.mxu0
  %v188 = vadd.f32 0.0, %v187
  %v189 = vpop.f32.mrf.mxu0
  %v190 = vadd.f32 0.0, %v189
  %191 = vmatmul.bf16.gmra.mxu0 %v154
  %v192 = vpop.f32.mrf.mxu0
  %v193 = vadd.f32 0.0, %v192
  %v194 = vpop.f32.mrf.mxu0
  %v195 = vadd.f32 0.0, %v194
  %196 = vmatmul.bf16.gmra.mxu0 %v157
  %v197 = vpop.f32.mrf.mxu0
  %v198 = vadd.f32 0.0, %v197
  %v199 = vpop.f32.mrf.mxu0
  %v200 = vadd.f32 0.0, %v199
  %201 = vmatmul.bf16.gmra.mxu0 %v160
  %v202 = vpop.f32.mrf.mxu0
  %v203 = vadd.f32 0.0, %v202
  %v204 = vpop.f32.mrf.mxu0
  %v205 = vadd.f32 0.0, %v204
  %206 = vmatmul.bf16.gmra.mxu0 %v163
  %v207 = vpop.f32.mrf.mxu0
  %v208 = vadd.f32 0.0, %v207
  %v209 = vpop.f32.mrf.mxu0
  %v210 = vadd.f32 0.0, %v209
  %211 = vmatmul.bf16.gmra.mxu0 %v166
  %v212 = vpop.f32.mrf.mxu0
  %v213 = vadd.f32 0.0, %v212
  %v214 = vpop.f32.mrf.mxu0
  %v215 = vadd.f32 0.0, %v214
  %216 = vdwg.mxu0
  %v217 = vadd.f32 %v111, %v178
  %v218 = vadd.f32 %v112, %v180
  %v219 = vadd.f32 %v113, %v183
  %v220 = vadd.f32 %v114, %v185
  %v221 = vadd.f32 %v115, %v188
  %v222 = vadd.f32 %v116, %v190
  %v223 = vadd.f32 %v117, %v193
  %v224 = vadd.f32 %v118, %v195
  %v225 = vadd.f32 %v119, %v198
  %v226 = vadd.f32 %v120, %v200
  %v227 = vadd.f32 %v121, %v203
  %v228 = vadd.f32 %v122, %v205
  %v229 = vadd.f32 %v123, %v208
  %v230 = vadd.f32 %v124, %v210
  %v231 = vadd.f32 %v125, %v213
  %v232 = vadd.f32 %v126, %v215
  %233 = vst [vmem:[#allocation2] sm:$0xff] %v217
  %234 = vst [vmem:[#allocation2 + $0x8] sm:$0xff] %v218
  %235 = vst [vmem:[#allocation2 + $0x10] sm:$0xff] %v219
  %236 = vst [vmem:[#allocation2 + $0x18] sm:$0xff] %v220
  %237 = vst [vmem:[#allocation2 + $0x20] sm:$0xff] %v221
  %238 = vst [vmem:[#allocation2 + $0x28] sm:$0xff] %v222
  %239 = vst [vmem:[#allocation2 + $0x30] sm:$0xff] %v223
  %240 = vst [vmem:[#allocation2 + $0x38] sm:$0xff] %v224
  %241 = vst [vmem:[#allocation2 + $0x40] sm:$0xff] %v225
  %242 = vst [vmem:[#allocation2 + $0x48] sm:$0xff] %v226
  %243 = vst [vmem:[#allocation2 + $0x50] sm:$0xff] %v227
  %244 = vst [vmem:[#allocation2 + $0x58] sm:$0xff] %v228
  %245 = vst [vmem:[#allocation2 + $0x60] sm:$0xff] %v229
  %246 = vst [vmem:[#allocation2 + $0x68] sm:$0xff] %v230
  %247 = vst [vmem:[#allocation2 + $0x70] sm:$0xff] %v231
  %248 = vst [vmem:[#allocation2 + $0x78] sm:$0xff] %v232
  %v249 = vld [vmem:[#allocation3] sm:$0xff]
  %v250 = vld [vmem:[#allocation3 + $0x8] sm:$0xff]
  %v251 = vld [vmem:[#allocation3 + $0x10] sm:$0xff]
  %v252 = vld [vmem:[#allocation3 + $0x18] sm:$0xff]
  %v253 = vld [vmem:[#allocation3 + $0x20] sm:$0xff]
  %v254 = vld [vmem:[#allocation3 + $0x28] sm:$0xff]
  %v255 = vld [vmem:[#allocation3 + $0x30] sm:$0xff]
  %v256 = vld [vmem:[#allocation3 + $0x38] sm:$0xff]
  %v257 = vld [vmem:[#allocation3 + $0x40] sm:$0xff]
  %v258 = vld [vmem:[#allocation3 + $0x48] sm:$0xff]
  %v259 = vld [vmem:[#allocation3 + $0x50] sm:$0xff]
  %v260 = vld [vmem:[#allocation3 + $0x58] sm:$0xff]
  %v261 = vld [vmem:[#allocation3 + $0x60] sm:$0xff]
  %v262 = vld [vmem:[#allocation3 + $0x68] sm:$0xff]
  %v263 = vld [vmem:[#allocation3 + $0x70] sm:$0xff]
  %v264 = vld [vmem:[#allocation3 + $0x78] sm:$0xff]
  %265 = vmatpush.bf16.msra.mxu0 0
  %266 = vmatpush.bf16.msra.mxu0 0
  %267 = vmatpush.bf16.msra.mxu0 0
  %268 = vmatpush.bf16.msra.mxu0 0
  %269 = vmatpush.bf16.msra.mxu0 %v110
  %270 = vmatpush.bf16.msra.mxu0 %v109
  %271 = vmatpush.bf16.msra.mxu0 %v108
  %272 = vmatpush.bf16.msra.mxu0 %v107
  %273 = vmatmul.bf16.gmra.mxu0 %v145
  %v274 = vpop.f32.mrf.mxu0
  %v275 = vadd.f32 0.0, %v274
  %v276 = vpop.f32.mrf.mxu0
  %v277 = vadd.f32 0.0, %v276
  %278 = vmatmul.bf16.gmra.mxu0 %v148
  %v279 = vpop.f32.mrf.mxu0
  %v280 = vadd.f32 0.0, %v279
  %v281 = vpop.f32.mrf.mxu0
  %v282 = vadd.f32 0.0, %v281
  %283 = vmatmul.bf16.gmra.mxu0 %v151
  %v284 = vpop.f32.mrf.mxu0
  %v285 = vadd.f32 0.0, %v284
  %v286 = vpop.f32.mrf.mxu0
  %v287 = vadd.f32 0.0, %v286
  %288 = vmatmul.bf16.gmra.mxu0 %v154
  %v289 = vpop.f32.mrf.mxu0
  %v290 = vadd.f32 0.0, %v289
  %v291 = vpop.f32.mrf.mxu0
  %v292 = vadd.f32 0.0, %v291
  %293 = vmatmul.bf16.gmra.mxu0 %v157
  %v294 = vpop.f32.mrf.mxu0
  %v295 = vadd.f32 0.0, %v294
  %v296 = vpop.f32.mrf.mxu0
  %v297 = vadd.f32 0.0, %v296
  %298 = vmatmul.bf16.gmra.mxu0 %v160
  %v299 = vpop.f32.mrf.mxu0
  %v300 = vadd.f32 0.0, %v299
  %v301 = vpop.f32.mrf.mxu0
  %v302 = vadd.f32 0.0, %v301
  %303 = vmatmul.bf16.gmra.mxu0 %v163
  %v304 = vpop.f32.mrf.mxu0
  %v305 = vadd.f32 0.0, %v304
  %v306 = vpop.f32.mrf.mxu0
  %v307 = vadd.f32 0.0, %v306
  %308 = vmatmul.bf16.gmra.mxu0 %v166
  %v309 = vpop.f32.mrf.mxu0
  %v310 = vadd.f32 0.0, %v309
  %v311 = vpop.f32.mrf.mxu0
  %v312 = vadd.f32 0.0, %v311
  %313 = vdwg.mxu0
  %v314 = vadd.f32 %v249, %v275
  %v315 = vadd.f32 %v250, %v277
  %v316 = vadd.f32 %v251, %v280
  %v317 = vadd.f32 %v252, %v282
  %v318 = vadd.f32 %v253, %v285
  %v319 = vadd.f32 %v254, %v287
  %v320 = vadd.f32 %v255, %v290
  %v321 = vadd.f32 %v256, %v292
  %v322 = vadd.f32 %v257, %v295
  %v323 = vadd.f32 %v258, %v297
  %v324 = vadd.f32 %v259, %v300
  %v325 = vadd.f32 %v260, %v302
  %v326 = vadd.f32 %v261, %v305
  %v327 = vadd.f32 %v262, %v307
  %v328 = vadd.f32 %v263, %v310
  %v329 = vadd.f32 %v264, %v312
  %vm330 = vcmask 261120
  %331 = vst.msk [vmem:[#allocation3] sm:$0xff] %vm330, %v314
  %332 = vst.msk [vmem:[#allocation3 + $0x8] sm:$0xff] %vm330, %v315
  %333 = vst.msk [vmem:[#allocation3 + $0x10] sm:$0xff] %vm330, %v316
  %334 = vst.msk [vmem:[#allocation3 + $0x18] sm:$0xff] %vm330, %v317
  %335 = vst.msk [vmem:[#allocation3 + $0x20] sm:$0xff] %vm330, %v318
  %336 = vst.msk [vmem:[#allocation3 + $0x28] sm:$0xff] %vm330, %v319
  %337 = vst.msk [vmem:[#allocation3 + $0x30] sm:$0xff] %vm330, %v320
  %338 = vst.msk [vmem:[#allocation3 + $0x38] sm:$0xff] %vm330, %v321
  %339 = vst.msk [vmem:[#allocation3 + $0x40] sm:$0xff] %vm330, %v322
  %340 = vst.msk [vmem:[#allocation3 + $0x48] sm:$0xff] %vm330, %v323
  %341 = vst.msk [vmem:[#allocation3 + $0x50] sm:$0xff] %vm330, %v324
  %342 = vst.msk [vmem:[#allocation3 + $0x58] sm:$0xff] %vm330, %v325
  %343 = vst.msk [vmem:[#allocation3 + $0x60] sm:$0xff] %vm330, %v326
  %344 = vst.msk [vmem:[#allocation3 + $0x68] sm:$0xff] %vm330, %v327
  %345 = vst.msk [vmem:[#allocation3 + $0x70] sm:$0xff] %vm330, %v328
  %346 = vst.msk [vmem:[#allocation3 + $0x78] sm:$0xff] %vm330, %v329
  // Predicated region
  $region22: #{sgnn_forward.5} parent=0 // pred_check
    %p347 = pneg %p18
  $region23: #{sgnn_forward.5} parent=0 // pred_check_branch
    %349 = sbr.rel (%p347) target = $region25
  $region24: #{sgnn_forward.5} parent=0 // pred_region
    %v350 = vld [vmem:[#allocation2] sm:$0xff]
    %v351 = vld [vmem:[#allocation2 + $0x8] sm:$0xff]
    %v352 = vld [vmem:[#allocation2 + $0x10] sm:$0xff]
    %v353 = vld [vmem:[#allocation2 + $0x18] sm:$0xff]
    %v354 = vld [vmem:[#allocation2 + $0x20] sm:$0xff]
    %v355 = vld [vmem:[#allocation2 + $0x28] sm:$0xff]
    %v356 = vld [vmem:[#allocation2 + $0x30] sm:$0xff]
    %v357 = vld [vmem:[#allocation2 + $0x38] sm:$0xff]
    %v358 = vld [vmem:[#allocation2 + $0x40] sm:$0xff]
    %v359 = vld [vmem:[#allocation2 + $0x48] sm:$0xff]
    %v360 = vld [vmem:[#allocation2 + $0x50] sm:$0xff]
    %v361 = vld [vmem:[#allocation2 + $0x58] sm:$0xff]
    %v362 = vld [vmem:[#allocation2 + $0x60] sm:$0xff]
    %v363 = vld [vmem:[#allocation2 + $0x68] sm:$0xff]
    %v364 = vld [vmem:[#allocation2 + $0x70] sm:$0xff]
    %v365 = vld [vmem:[#allocation2 + $0x78] sm:$0xff]
    %v366 = vld [vmem:[#allocation3] sm:$0xff]
    %v367 = vld [vmem:[#allocation3 + $0x8] sm:$0xff]
    %v368 = vld [vmem:[#allocation3 + $0x10] sm:$0xff]
    %v369 = vld [vmem:[#allocation3 + $0x18] sm:$0xff]
    %v370 = vld [vmem:[#allocation3 + $0x20] sm:$0xff]
    %v371 = vld [vmem:[#allocation3 + $0x28] sm:$0xff]
    %v372 = vld [vmem:[#allocation3 + $0x30] sm:$0xff]
    %v373 = vld [vmem:[#allocation3 + $0x38] sm:$0xff]
    %v374 = vld [vmem:[#allocation3 + $0x40] sm:$0xff]
    %v375 = vld [vmem:[#allocation3 + $0x48] sm:$0xff]
    %v376 = vld [vmem:[#allocation3 + $0x50] sm:$0xff]
    %v377 = vld [vmem:[#allocation3 + $0x58] sm:$0xff]
    %v378 = vld [vmem:[#allocation3 + $0x60] sm:$0xff]
    %v379 = vld [vmem:[#allocation3 + $0x68] sm:$0xff]
    %v380 = vld [vmem:[#allocation3 + $0x70] sm:$0xff]
    %v381 = vld [vmem:[#allocation3 + $0x78] sm:$0xff]
    %382 = vmatpush.msra.mxu0 %v381
    %383 = vmatpush.msra.mxu0 %v380
    %384 = vmatpush.msra.mxu0 %v379
    %385 = vmatpush.msra.mxu0 %v378
    %386 = vmatpush.msra.mxu0 %v377
    %387 = vmatpush.msra.mxu0 %v376
    %388 = vmatpush.msra.mxu0 %v375
    %389 = vmatpush.msra.mxu0 %v374
    %390 = vmatpush.msra.mxu0 %v373
    %391 = vmatpush.msra.mxu0 %v372
    %392 = vmatpush.msra.mxu0 %v371
    %393 = vmatpush.msra.mxu0 %v370
    %394 = vmatpush.msra.mxu0 %v369
    %395 = vmatpush.msra.mxu0 %v368
    %396 = vmatpush.msra.mxu0 %v367
    %397 = vmatpush.msra.mxu0 %v366
    %398 = vmatmul.f32.gmra.mxu0 %v350
    %v399 = vpop.f32.mrf.mxu0
    %v400 = vadd.f32 0.0, %v399
    %401 = vmatmul.f32.gmra.mxu0 %v351
    %v402 = vpop.f32.mrf.mxu0
    %v403 = vadd.f32 0.0, %v402
    %404 = vmatmul.f32.gmra.mxu0 %v352
    %v405 = vpop.f32.mrf.mxu0
    %v406 = vadd.f32 0.0, %v405
    %407 = vmatmul.f32.gmra.mxu0 %v353
    %v408 = vpop.f32.mrf.mxu0
    %v409 = vadd.f32 0.0, %v408
    %410 = vmatmul.f32.gmra.mxu0 %v354
    %v411 = vpop.f32.mrf.mxu0
    %v412 = vadd.f32 0.0, %v411
    %413 = vmatmul.f32.gmra.mxu0 %v355
    %v414 = vpop.f32.mrf.mxu0
    %v415 = vadd.f32 0.0, %v414
    %416 = vmatmul.f32.gmra.mxu0 %v356
    %v417 = vpop.f32.mrf.mxu0
    %v418 = vadd.f32 0.0, %v417
    %419 = vmatmul.f32.gmra.mxu0 %v357
    %v420 = vpop.f32.mrf.mxu0
    %v421 = vadd.f32 0.0, %v420
    %422 = vmatmul.f32.gmra.mxu0 %v358
    %v423 = vpop.f32.mrf.mxu0
    %v424 = vadd.f32 0.0, %v423
    %425 = vmatmul.f32.gmra.mxu0 %v359
    %v426 = vpop.f32.mrf.mxu0
    %v427 = vadd.f32 0.0, %v426
    %428 = vmatmul.f32.gmra.mxu0 %v360
    %v429 = vpop.f32.mrf.mxu0
    %v430 = vadd.f32 0.0, %v429
    %431 = vmatmul.f32.gmra.mxu0 %v361
    %v432 = vpop.f32.mrf.mxu0
    %v433 = vadd.f32 0.0, %v432
    %434 = vmatmul.f32.gmra.mxu0 %v362
    %v435 = vpop.f32.mrf.mxu0
    %v436 = vadd.f32 0.0, %v435
    %437 = vmatmul.f32.gmra.mxu0 %v363
    %v438 = vpop.f32.mrf.mxu0
    %v439 = vadd.f32 0.0, %v438
    %440 = vmatmul.f32.gmra.mxu0 %v364
    %v441 = vpop.f32.mrf.mxu0
    %v442 = vadd.f32 0.0, %v441
    %443 = vmatmul.f32.gmra.mxu0 %v365
    %v444 = vpop.f32.mrf.mxu0
    %v445 = vadd.f32 0.0, %v444
    %446 = vdwg.mxu0
    %447 = vmatpush.msra.mxu0 %v445
    %448 = vmatpush.msra.mxu0 %v442
    %449 = vmatpush.msra.mxu0 %v439
    %450 = vmatpush.msra.mxu0 %v436
    %451 = vmatpush.msra.mxu0 %v433
    %452 = vmatpush.msra.mxu0 %v430
    %453 = vmatpush.msra.mxu0 %v427
    %454 = vmatpush.msra.mxu0 %v424
    %455 = vmatpush.msra.mxu0 %v421
    %456 = vmatpush.msra.mxu0 %v418
    %457 = vmatpush.msra.mxu0 %v415
    %458 = vmatpush.msra.mxu0 %v412
    %459 = vmatpush.msra.mxu0 %v409
    %460 = vmatpush.msra.mxu0 %v406
    %461 = vmatpush.msra.mxu0 %v403
    %462 = vmatpush.msra.mxu0 %v400
    %463 = vmatmul.f32.gmra.mxu0 %v350
    %v464 = vpop.f32.mrf.mxu0
    %v465 = vadd.f32 0.0, %v464
    %466 = vmatmul.f32.gmra.mxu0 %v351
    %v467 = vpop.f32.mrf.mxu0
    %v468 = vadd.f32 0.0, %v467
    %469 = vmatmul.f32.gmra.mxu0 %v352
    %v470 = vpop.f32.mrf.mxu0
    %v471 = vadd.f32 0.0, %v470
    %472 = vmatmul.f32.gmra.mxu0 %v353
    %v473 = vpop.f32.mrf.mxu0
    %v474 = vadd.f32 0.0, %v473
    %475 = vmatmul.f32.gmra.mxu0 %v354
    %v476 = vpop.f32.mrf.mxu0
    %v477 = vadd.f32 0.0, %v476
    %478 = vmatmul.f32.gmra.mxu0 %v355
    %v479 = vpop.f32.mrf.mxu0
    %v480 = vadd.f32 0.0, %v479
    %481 = vmatmul.f32.gmra.mxu0 %v356
    %v482 = vpop.f32.mrf.mxu0
    %v483 = vadd.f32 0.0, %v482
    %484 = vmatmul.f32.gmra.mxu0 %v357
    %v485 = vpop.f32.mrf.mxu0
    %v486 = vadd.f32 0.0, %v485
    %487 = vmatmul.f32.gmra.mxu0 %v358
    %v488 = vpop.f32.mrf.mxu0
    %v489 = vadd.f32 0.0, %v488
    %490 = vmatmul.f32.gmra.mxu0 %v359
    %v491 = vpop.f32.mrf.mxu0
    %v492 = vadd.f32 0.0, %v491
    %493 = vmatmul.f32.gmra.mxu0 %v360
    %v494 = vpop.f32.mrf.mxu0
    %v495 = vadd.f32 0.0, %v494
    %496 = vmatmul.f32.gmra.mxu0 %v361
    %v497 = vpop.f32.mrf.mxu0
    %v498 = vadd.f32 0.0, %v497
    %499 = vmatmul.f32.gmra.mxu0 %v362
    %v500 = vpop.f32.mrf.mxu0
    %v501 = vadd.f32 0.0, %v500
    %502 = vmatmul.f32.gmra.mxu0 %v363
    %v503 = vpop.f32.mrf.mxu0
    %v504 = vadd.f32 0.0, %v503
    %505 = vmatmul.f32.gmra.mxu0 %v364
    %v506 = vpop.f32.mrf.mxu0
    %v507 = vadd.f32 0.0, %v506
    %508 = vmatmul.f32.gmra.mxu0 %v365
    %v509 = vpop.f32.mrf.mxu0
    %v510 = vadd.f32 0.0, %v509
    %511 = vdwg.mxu0
    %528 = vrot.lane.b32.xlu0 %v400, 32
    %v529 = vpop.permute.xlu0 %528
    %530 = vrot.lane.b32.xlu0 %v403, 32
    %v531 = vpop.permute.xlu0 %530
    %532 = vrot.lane.b32.xlu0 %v406, 32
    %v533 = vpop.permute.xlu0 %532
    %534 = vrot.lane.b32.xlu0 %v409, 32
    %v535 = vpop.permute.xlu0 %534
    %536 = vrot.lane.b32.xlu0 %v412, 32
    %v537 = vpop.permute.xlu0 %536
    %538 = vrot.lane.b32.xlu0 %v415, 32
    %v539 = vpop.permute.xlu0 %538
    %540 = vrot.lane.b32.xlu0 %v418, 32
    %v541 = vpop.permute.xlu0 %540
    %542 = vrot.lane.b32.xlu0 %v421, 32
    %v543 = vpop.permute.xlu0 %542
    %544 = vrot.lane.b32.xlu0 %v424, 32
    %v545 = vpop.permute.xlu0 %544
    %546 = vrot.lane.b32.xlu0 %v427, 32
    %v547 = vpop.permute.xlu0 %546
    %548 = vrot.lane.b32.xlu0 %v430, 32
    %v549 = vpop.permute.xlu0 %548
    %550 = vrot.lane.b32.xlu0 %v433, 32
    %v551 = vpop.permute.xlu0 %550
    %552 = vrot.lane.b32.xlu0 %v436, 32
    %v553 = vpop.permute.xlu0 %552
    %554 = vrot.lane.b32.xlu0 %v439, 32
    %v555 = vpop.permute.xlu0 %554
    %556 = vrot.lane.b32.xlu0 %v442, 32
    %v557 = vpop.permute.xlu0 %556
    %558 = vrot.lane.b32.xlu0 %v445, 32
    %v559 = vpop.permute.xlu0 %558
    %592 = vrot.lane.b32.xlu0 %v465, 64
    %v593 = vpop.permute.xlu0 %592
    %594 = vrot.lane.b32.xlu0 %v468, 64
    %v595 = vpop.permute.xlu0 %594
    %596 = vrot.lane.b32.xlu0 %v471, 64
    %v597 = vpop.permute.xlu0 %596
    %598 = vrot.lane.b32.xlu0 %v474, 64
    %v599 = vpop.permute.xlu0 %598
    %600 = vrot.lane.b32.xlu0 %v477, 64
    %v601 = vpop.permute.xlu0 %600
    %602 = vrot.lane.b32.xlu0 %v480, 64
    %v603 = vpop.permute.xlu0 %602
    %604 = vrot.lane.b32.xlu0 %v483, 64
    %v605 = vpop.permute.xlu0 %604
    %606 = vrot.lane.b32.xlu0 %v486, 64
    %v607 = vpop.permute.xlu0 %606
    %608 = vrot.lane.b32.xlu0 %v489, 64
    %v609 = vpop.permute.xlu0 %608
    %610 = vrot.lane.b32.xlu0 %v492, 64
    %v611 = vpop.permute.xlu0 %610
    %612 = vrot.lane.b32.xlu0 %v495, 64
    %v613 = vpop.permute.xlu0 %612
    %614 = vrot.lane.b32.xlu0 %v498, 64
    %v615 = vpop.permute.xlu0 %614
    %616 = vrot.lane.b32.xlu0 %v501, 64
    %v617 = vpop.permute.xlu0 %616
    %618 = vrot.lane.b32.xlu0 %v504, 64
    %v619 = vpop.permute.xlu0 %618
    %620 = vrot.lane.b32.xlu0 %v507, 64
    %v621 = vpop.permute.xlu0 %620
    %622 = vrot.lane.b32.xlu0 %v510, 64
    %v623 = vpop.permute.xlu0 %622
    %v640 = vsel %vm330, %v366, %v529
    %v641 = vsel %vm330, %v367, %v531
    %v642 = vsel %vm330, %v368, %v533
    %v643 = vsel %vm330, %v369, %v535
    %v644 = vsel %vm330, %v370, %v537
    %v645 = vsel %vm330, %v371, %v539
    %v646 = vsel %vm330, %v372, %v541
    %v647 = vsel %vm330, %v373, %v543
    %v648 = vsel %vm330, %v374, %v545
    %v649 = vsel %vm330, %v375, %v547
    %v650 = vsel %vm330, %v376, %v549
    %v651 = vsel %vm330, %v377, %v551
    %v652 = vsel %vm330, %v378, %v553
    %v653 = vsel %vm330, %v379, %v555
    %v654 = vsel %vm330, %v380, %v557
    %v655 = vsel %vm330, %v381, %v559
    %v656 = vsel %vm143, %v640, %v593
    %v657 = vsel %vm143, %v641, %v595
    %v658 = vsel %vm143, %v642, %v597
    %v659 = vsel %vm143, %v643, %v599
    %v660 = vsel %vm143, %v644, %v601
    %v661 = vsel %vm143, %v645, %v603
    %v662 = vsel %vm143, %v646, %v605
    %v663 = vsel %vm143, %v647, %v607
    %v664 = vsel %vm143, %v648, %v609
    %v665 = vsel %vm143, %v649, %v611
    %v666 = vsel %vm143, %v650, %v613
    %v667 = vsel %vm143, %v651, %v615
    %v668 = vsel %vm143, %v652, %v617
    %v669 = vsel %vm143, %v653, %v619
    %v670 = vsel %vm143, %v654, %v621
    %v671 = vsel %vm143, %v655, %v623
    %v672 = vmul.f32 %v656, 0.0078125
    %v673 = vmul.f32 %v657, 0.0078125
    %v674 = vmul.f32 %v658, 0.0078125
    %v675 = vmul.f32 %v659, 0.0078125
    %v676 = vmul.f32 %v660, 0.0078125
    %v677 = vmul.f32 %v661, 0.0078125
    %v678 = vmul.f32 %v662, 0.0078125
    %v679 = vmul.f32 %v663, 0.0078125
    %v680 = vmul.f32 %v664, 0.0078125
    %v681 = vmul.f32 %v665, 0.0078125
    %v682 = vmul.f32 %v666, 0.0078125
    %v683 = vmul.f32 %v667, 0.0078125
    %v684 = vmul.f32 %v668, 0.0078125
    %v685 = vmul.f32 %v669, 0.0078125
    %v686 = vmul.f32 %v670, 0.0078125
    %v687 = vmul.f32 %v671, 0.0078125
    %v688 = vpack.c.bf16 %v672, %v672
    %v689 = vpack.c.bf16 %v673, %v673
    %v690 = vpack.c.bf16 %v674, %v674
    %v691 = vpack.c.bf16 %v675, %v675
    %v692 = vpack.c.bf16 %v676, %v676
    %v693 = vpack.c.bf16 %v677, %v677
    %v694 = vpack.c.bf16 %v678, %v678
    %v695 = vpack.c.bf16 %v679, %v679
    %v696 = vpack.c.bf16 %v680, %v680
    %v697 = vpack.c.bf16 %v681, %v681
    %v698 = vpack.c.bf16 %v682, %v682
    %v699 = vpack.c.bf16 %v683, %v683
    %v700 = vpack.c.bf16 %v684, %v684
    %v701 = vpack.c.bf16 %v685, %v685
    %v702 = vpack.c.bf16 %v686, %v686
    %v703 = vpack.c.bf16 %v687, %v687
    %vm704 = vcmask 781312
    %705 = vst.msk [vmem:[%s4] sm:$0xf] %vm704, %v688
    %706 = vst.msk [vmem:[%s4 + $0x4] sm:$0xf] %vm704, %v689
    %707 = vst.msk [vmem:[%s4 + $0x8] sm:$0xf] %vm704, %v690
    %708 = vst.msk [vmem:[%s4 + $0xc] sm:$0xf] %vm704, %v691
    %709 = vst.msk [vmem:[%s4 + $0x10] sm:$0xf] %vm704, %v692
    %710 = vst.msk [vmem:[%s4 + $0x14] sm:$0xf] %vm704, %v693
    %711 = vst.msk [vmem:[%s4 + $0x18] sm:$0xf] %vm704, %v694
    %712 = vst.msk [vmem:[%s4 + $0x1c] sm:$0xf] %vm704, %v695
    %713 = vst.msk [vmem:[%s4 + $0x20] sm:$0xf] %vm704, %v696
    %714 = vst.msk [vmem:[%s4 + $0x24] sm:$0xf] %vm704, %v697
    %715 = vst.msk [vmem:[%s4 + $0x28] sm:$0xf] %vm704, %v698
    %716 = vst.msk [vmem:[%s4 + $0x2c] sm:$0xf] %vm704, %v699
    %717 = vst.msk [vmem:[%s4 + $0x30] sm:$0xf] %vm704, %v700
    %718 = vst.msk [vmem:[%s4 + $0x34] sm:$0xf] %vm704, %v701
    %719 = vst.msk [vmem:[%s4 + $0x38] sm:$0xf] %vm704, %v702
    %720 = vst.msk [vmem:[%s4 + $0x3c] sm:$0xf] %vm704, %v703
  $region25: #{sgnn_forward.5} parent=0 // pred_fallthru
    _
  // Predicated region
  $region26: #{sgnn_forward.5} parent=0 // pred_check
    _
  $region27: #{sgnn_forward.5} parent=0 // pred_check_branch
    %722 = sbr.rel (0) target = $region29
  $region28: #{sgnn_forward.5} parent=0 // pred_region
    _
  $region29: #{sgnn_forward.5} parent=0 // pred_fallthru
    _
  // Predicated region
  $region30: #{sgnn_forward.5} parent=0 // pred_check
    _
  $region31: #{sgnn_forward.5} parent=0 // pred_check_branch
    %724 = sbr.rel (0) target = $region33
  $region32: #{sgnn_forward.5} parent=0 // pred_region
    _
  $region33: #{sgnn_forward.5} parent=0 // pred_fallthru
    _

</llo_original>
